<compile_context>
chip_gen: v7x
topology: tpu7x:2x2x1
jax: 0.10.0
libtpu: 0.0.40
codegen_flags: <defaults>
</compile_context>

<pallas_src>
import math

import jax
import jax.numpy as jnp
import numpy as np
from jax import lax
from jax.experimental import pallas as pl
from jax.experimental.pallas import tpu as pltpu


# ----------------------------------------------------------------------------
# Pallas kernel
# ----------------------------------------------------------------------------
def complex_gru_kernel(
    # inputs
    x_ref,       # [Tc*Bp, 2I]   time-chunk, lane-stacked [real_x | imag_x]
    w_i_ref,     # [2I, 12H]     fused input weights   (cols = gate-major, stream-minor)
    b_i_ref,     # [1, 12H]      fused input biases    (r/z: b_ih+b_hh folded, n: b_in)
    w_h_ref,     # [4H, 12H]     block-diag fused hidden weights (per stream)
    b_hn_ref,    # [1, 4H]       b_hn per stream
    w_fc_ref,    # [4H, 2O]      fused FC weights (complex combine folded in)
    b_fc_ref,    # [1, 2O]       [b_fc_real | b_fc_imag]
    # outputs
    out_ref,     # [Tc*Bp, 2O]   tanh(FC), lanes = [real_out | imag_out]
    # scratch
    h_sc,        # [Bp, 4H]      hidden carry, lanes = [r2r | r2i | i2r | i2i]
    gi_sc,       # [Tc*Bp, 12H]  precomputed input gates for this chunk
    hist_sc,     # [Tc*Bp, 4H]   per-step hidden history (FC input slab)
):
    bp, four_h = h_sc.shape
    eight_h = 2 * four_h                    # r|z gate columns
    tc = gi_sc.shape[0] // bp               # timesteps in this chunk

    # Zero the recurrent state only on the first time chunk.
    @pl.when(pl.program_id(0) == 0)
    def _init():
        h_sc[...] = jnp.zeros_like(h_sc)

    # --- 1. Hoisted, chunk-wide input-gate precompute: one MXU op ------------
    # (bf16 operands, f32 accumulation; bias pre-folded.)
    gi_sc[...] = (
        jnp.dot(x_ref[...], w_i_ref[...], preferred_element_type=jnp.float32)
        + b_i_ref[...]
    )

    # Hoist loop-invariant loads / broadcasts out of the recurrence.
    w_h = w_h_ref[...]                                            # [4H, 12H]
    b_hn = jnp.broadcast_to(b_hn_ref[...], (bp, four_h))          # [Bp, 4H]

    # --- 2. Recurrence: one fused hidden matmul + wide sigmoid/tanh per step -
    def step(t, h):
        off = pl.multiple_of(t * bp, 8)
        g = gi_sc[pl.ds(off, bp), :]                              # [Bp, 12H]
        gh = jnp.dot(h, w_h, preferred_element_type=jnp.float32)  # [Bp, 12H]
        rz = jax.nn.sigmoid(g[:, :eight_h] + gh[:, :eight_h])     # [Bp, 8H]
        r = rz[:, :four_h]
        z = rz[:, four_h:]
        n = jnp.tanh(g[:, eight_h:] + r * (gh[:, eight_h:] + b_hn))
        h = n + z * (h - n)                                       # == (1-z)*n + z*h
        hist_sc[pl.ds(off, bp), :] = h                            # plain 4H-lane store
        return h

    h_sc[...] = lax.fori_loop(0, tc, step, h_sc[...], unroll=min(8, tc))

    # --- 3. Chunk-wide FC + tanh (complex combine folded into w_fc) ----------
    out_ref[...] = jnp.tanh(
        jnp.dot(hist_sc[...], w_fc_ref[...], preferred_element_type=jnp.float32)
        + b_fc_ref[...]
    )


# ----------------------------------------------------------------------------
# Wrapper
# ----------------------------------------------------------------------------
def _vmem_capacity_bytes():
    try:
        return int(pltpu.get_tpu_info().vmem_capacity_bytes)
    except Exception:
        return 64 * 1024 * 1024   # conservative (v7x-sized) fallback


def _pick_time_chunk(T, Bp, I, H, O):
    """Largest time chunk whose scratch + pipeline buffers fit a VMEM budget."""
    budget = _vmem_capacity_bytes() // 2          # headroom for compiler scratch
    # grid-invariant weights/biases, conservatively counted double-buffered
    fixed = 2 * ((2 * I) * (12 * H) * 2 + (12 * H) * 4
                 + (4 * H) * (12 * H) * 4 + (4 * H) * 4
                 + (4 * H) * (2 * O) * 4 + (2 * O) * 4)
    # per-timestep cost: gi + hist scratch (f32) + double-buffered x (bf16) / out (f32)
    per_t = Bp * ((12 * H) * 4 + (4 * H) * 4 + 2 * (2 * I) * 2 + 2 * (2 * O) * 4)
    tc_max = int(max(8, min(512, (budget - fixed) // max(per_t, 1))))
    if T <= tc_max:
        return T
    n_chunks = -(-T // tc_max)                    # ceil
    return -(-T // n_chunks)                      # balanced chunk size


def complex_sequence_model_forward(x, params, time_chunk=None,
                                   input_matmul_dtype=jnp.bfloat16):
    """x: [B, F, T] float32 -> [B, 2*O, T] float32 (PyTorch forward semantics)."""
    B, F, T = x.shape
    I = F // 2
    H = params["hidden_size"]
    O = params["output_size"]
    Bp = ((B + 7) // 8) * 8                       # pad batch to 8 sublanes

    Tc = int(time_chunk) if time_chunk is not None else _pick_time_chunk(T, Bp, I, H, O)
    Tc = max(1, min(Tc, T))
    Tp = ((T + Tc - 1) // Tc) * Tc                # pad T; never degrade to Tc=1 grids
    n_chunks = Tp // Tc

    # Lane-stacked input [real_x | imag_x], time-major rows (t*Bp + b).
    xr = jnp.transpose(x[:, :I, :], (2, 0, 1))    # [T, B, I]
    xi = jnp.transpose(x[:, I:, :], (2, 0, 1))    # [T, B, I]
    x2 = jnp.concatenate([xr, xi], axis=-1)       # [T, B, 2I]
    x2 = jnp.pad(x2, ((0, Tp - T), (0, Bp - B), (0, 0)))
    x_flat = x2.reshape(Tp * Bp, 2 * I).astype(input_matmul_dtype)
    w_i = params["w_i_all"].astype(input_matmul_dtype)

    vmem_limit = min(_vmem_capacity_bytes() * 3 // 4, 96 * 1024 * 1024)

    grid_spec = pltpu.PrefetchScalarGridSpec(
        num_scalar_prefetch=0,
        grid=(n_chunks,),
        in_specs=[
            pl.BlockSpec((Tc * Bp, 2 * I), lambda i: (i, 0)),      # x chunk
            pl.BlockSpec((2 * I, 12 * H), lambda i: (0, 0)),       # w_i_all
            pl.BlockSpec((1, 12 * H), lambda i: (0, 0)),           # b_i_all
            pl.BlockSpec((4 * H, 12 * H), lambda i: (0, 0)),       # w_h_all
            pl.BlockSpec((1, 4 * H), lambda i: (0, 0)),            # b_hn_all
            pl.BlockSpec((4 * H, 2 * O), lambda i: (0, 0)),        # w_fc_all
            pl.BlockSpec((1, 2 * O), lambda i: (0, 0)),            # b_fc
        ],
        out_specs=pl.BlockSpec((Tc * Bp, 2 * O), lambda i: (i, 0)),
        scratch_shapes=[
            pltpu.VMEM((Bp, 4 * H), jnp.float32),                  # hidden carry
            pltpu.VMEM((Tc * Bp, 12 * H), jnp.float32),            # input gates
            pltpu.VMEM((Tc * Bp, 4 * H), jnp.float32),             # h history
        ],
    )

    out = pl.pallas_call(
        complex_gru_kernel,
        out_shape=jax.ShapeDtypeStruct((Tp * Bp, 2 * O), jnp.float32),
        grid_spec=grid_spec,
        compiler_params=pltpu.CompilerParams(
            dimension_semantics=("arbitrary",),    # sequential hidden-state carry
            vmem_limit_bytes=vmem_limit,
        ),
    )(x_flat, w_i, params["b_i_all"], params["w_h_all"],
      params["b_hn_all"], params["w_fc_all"], params["b_fc"])

    out = out.reshape(Tp, Bp, 2 * O)[:T, :B, :]                    # drop T/B padding
    real_out = jnp.transpose(out[:, :, :O], (1, 2, 0))             # [B, O, T]
    imag_out = jnp.transpose(out[:, :, O:], (1, 2, 0))             # [B, O, T]
    return jnp.concatenate([real_out, imag_out], axis=1)           # [B, 2O, T]


# ----------------------------------------------------------------------------
# Deterministic parameter init (PyTorch-style uniform(-1/sqrt(H), 1/sqrt(H)))
# and fused weight-slab construction for the lane-stacked layout.
# Streams (lane order of the hidden state):
#   0: r2r = real GRU on real input      1: r2i = imag GRU on real input
#   2: i2r = real GRU on imag input      3: i2i = imag GRU on imag input
# ----------------------------------------------------------------------------
def init_params(key, input_size, output_size, hidden_size):
    I, O, H = input_size, output_size, hidden_size
    stdv = 1.0 / math.sqrt(H)
    k_rgru, k_igru, k_rfc, k_ifc = jax.random.split(key, 4)

    def gru_raw(k):
        k1, k2, k3, k4 = jax.random.split(k, 4)
        w_ih = jax.random.uniform(k1, (3 * H, I), jnp.float32, -stdv, stdv)
        w_hh = jax.random.uniform(k2, (3 * H, H), jnp.float32, -stdv, stdv)
        b_ih = jax.random.uniform(k3, (3 * H,), jnp.float32, -stdv, stdv)
        b_hh = jax.random.uniform(k4, (3 * H,), jnp.float32, -stdv, stdv)
        return w_ih, w_hh, b_ih, b_hh

    def fc_raw(k):
        k1, k2 = jax.random.split(k)
        w = jax.random.uniform(k1, (O, H), jnp.float32, -stdv, stdv)
        b = jax.random.uniform(k2, (O,), jnp.float32, -stdv, stdv)
        return w, b

    real_raw, imag_raw = gru_raw(k_rgru), gru_raw(k_igru)
    fc_r, fc_i = fc_raw(k_rfc), fc_raw(k_ifc)

    w_ih = [real_raw[0], imag_raw[0]]
    w_hh = [real_raw[1], imag_raw[1]]
    b_ih = [real_raw[2], imag_raw[2]]
    b_hh = [real_raw[3], imag_raw[3]]

    def gate(a, k):                     # k-th gate block (r=0, z=1, n=2)
        return a[k * H:(k + 1) * H]

    streams = ((0, 0), (1, 0), (0, 1), (1, 1))       # (gru_index, input_half)
    zI = jnp.zeros((I, H), jnp.float32)
    zH = jnp.zeros((H, H), jnp.float32)
    zO = jnp.zeros((H, O), jnp.float32)

    # Fused input weights [2I, 12H] + biases; columns are gate-major (r,z,n),
    # stream-minor.  Rows 0:I act on real_x, rows I:2I on imag_x.
    wi_cols, bi_cols = [], []
    for gk in range(3):
        for (g, ih) in streams:
            wt = gate(w_ih[g], gk).T                              # [I, H]
            wi_cols.append(jnp.concatenate(
                [wt if ih == 0 else zI, wt if ih == 1 else zI], axis=0))
            if gk < 2:   # r/z: fold the h-independent b_hh into the input bias
                bi_cols.append(gate(b_ih[g], gk) + gate(b_hh[g], gk))
            else:        # n: only b_in here (b_hn stays inside r*(...))
                bi_cols.append(gate(b_ih[g], gk))
    w_i_all = jnp.concatenate(wi_cols, axis=1)                    # [2I, 12H]
    b_i_all = jnp.concatenate(bi_cols).reshape(1, 12 * H)

    # Block-diagonal fused hidden weights [4H, 12H]: stream s rows feed only
    # stream s gate columns, using that stream's GRU weight set.
    wh_rows = []
    for s, (g, _) in enumerate(streams):
        blocks = []
        for gk in range(3):
            for s2 in range(4):
                blocks.append(gate(w_hh[g], gk).T if s2 == s else zH)
        wh_rows.append(jnp.concatenate(blocks, axis=1))           # [H, 12H]
    w_h_all = jnp.concatenate(wh_rows, axis=0)                    # [4H, 12H]
    b_hn_all = jnp.concatenate(
        [gate(b_hh[g], 2) for (g, _) in streams]).reshape(1, 4 * H)

    # Fused FC [4H, 2O] with the complex combine folded in:
    #   real_out = (r2r - i2i) @ Wfr.T + bfr ; imag_out = (i2r + r2i) @ Wfi.T + bfi
    wfr, bfr = fc_r
    wfi, bfi = fc_i
    w_fc_all = jnp.concatenate([
        jnp.concatenate([wfr.T, zO], axis=1),     # r2r -> +real
        jnp.concatenate([zO, wfi.T], axis=1),     # r2i -> +imag
        jnp.concatenate([zO, wfi.T], axis=1),     # i2r -> +imag
        jnp.concatenate([-wfr.T, zO], axis=1),    # i2i -> -real
    ], axis=0)                                                    # [4H, 2O]
    b_fc = jnp.concatenate([bfr, bfi]).reshape(1, 2 * O)

    return {
        "hidden_size": H,
        "output_size": O,
        "w_i_all": w_i_all, "b_i_all": b_i_all,
        "w_h_all": w_h_all, "b_hn_all": b_hn_all,
        "w_fc_all": w_fc_all, "b_fc": b_fc,
        "raw": {"real_gru": real_raw, "imag_gru": imag_raw,
                "fc_real": fc_r, "fc_imag": fc_i},
    }


# ----------------------------------------------------------------------------
# Pure-JAX reference (mirrors torch.nn.GRU / the module's forward)
# ----------------------------------------------------------------------------
def _gru_ref(x, raw, H):
    w_ih, w_hh, b_ih, b_hh = raw

    def step(h, x_t):
        gi = x_t @ w_ih.T + b_ih
        gh = h @ w_hh.T + b_hh
        i_r, i_z, i_n = jnp.split(gi, 3, axis=-1)
        h_r, h_z, h_n = jnp.split(gh, 3, axis=-1)
        r = jax.nn.sigmoid(i_r + h_r)
        z = jax.nn.sigmoid(i_z + h_z)
        n = jnp.tanh(i_n + r * h_n)
        h_new = (1.0 - z) * n + z * h
        return h_new, h_new

    h0 = jnp.zeros((x.shape[0], H), jnp.float32)
    _, ys = lax.scan(step, h0, jnp.swapaxes(x, 0, 1))
    return jnp.swapaxes(ys, 0, 1)


def reference_forward(x, params):
    B, F, T = x.shape
    I = F // 2
    H = params["hidden_size"]
    raw = params["raw"]
    real = jnp.transpose(x[:, :I, :], (0, 2, 1))
    imag = jnp.transpose(x[:, I:, :], (0, 2, 1))
    r2r = _gru_ref(real, raw["real_gru"], H)
    r2i = _gru_ref(real, raw["imag_gru"], H)
    i2r = _gru_ref(imag, raw["real_gru"], H)
    i2i = _gru_ref(imag, raw["imag_gru"], H)
    real_out = r2r - i2i
    imag_out = i2r + r2i
    wfr, bfr = raw["fc_real"]
    wfi, bfi = raw["fc_imag"]
    real_out = jnp.tanh(real_out @ wfr.T + bfr)
    imag_out = jnp.tanh(imag_out @ wfi.T + bfi)
    real_out = jnp.transpose(real_out, (0, 2, 1))
    imag_out = jnp.transpose(imag_out, (0, 2, 1))
    return jnp.concatenate([real_out, imag_out], axis=1)


# ----------------------------------------------------------------------------
if __name__ == "__main__":
    B, F, T = 2, 16, 8
    input_size = F // 2         # 8
    output_size = input_size    # so cat([real, imag], 1) restores F
    hidden_size = 32

    key = jax.random.PRNGKey(0)
    kx, kp = jax.random.split(key)
    x = jax.random.normal(kx, (B, F, T), jnp.float32)
    params = init_params(kp, input_size, output_size, hidden_size)

    ref = jax.block_until_ready(reference_forward(x, params))

    # 1) f32 MXU path, multi-chunk (exercises the hidden-state carry), tight tol.
    out_f32 = jax.block_until_ready(
        complex_sequence_model_forward(x, params, time_chunk=4,
                                       input_matmul_dtype=jnp.float32))
    assert out_f32.shape == (B, F, T), out_f32.shape
    np.testing.assert_allclose(np.asarray(out_f32), np.asarray(ref),
                               rtol=2e-3, atol=2e-3)

    # 2) default bf16 input-matmul path with a non-dividing chunk (time padding).
    out_bf16 = jax.block_until_ready(
        complex_sequence_model_forward(x, params, time_chunk=3))
    np.testing.assert_allclose(np.asarray(out_bf16), np.asarray(ref),
                               rtol=2e-2, atol=2e-2)

    # 3) VMEM-derived automatic chunk picker.
    out_auto = jax.block_until_ready(complex_sequence_model_forward(x, params))
    np.testing.assert_allclose(np.asarray(out_auto), np.asarray(ref),
                               rtol=2e-2, atol=2e-2)

    print("KERNEL_OK")
</pallas_src>

<mosaic_0001>
module attributes {stable_mosaic.version = 11 : i64} {
  func.func @complex_gru_kernel(%arg0: i32, %arg1: memref<32x16xf32, #tpu.memory_space<vmem>>, %arg2: memref<16x384xf32, #tpu.memory_space<vmem>>, %arg3: memref<1x384xf32, #tpu.memory_space<vmem>>, %arg4: memref<128x384xf32, #tpu.memory_space<vmem>>, %arg5: memref<1x128xf32, #tpu.memory_space<vmem>>, %arg6: memref<128x16xf32, #tpu.memory_space<vmem>>, %arg7: memref<1x16xf32, #tpu.memory_space<vmem>>, %arg8: memref<32x16xf32, #tpu.memory_space<vmem>>, %arg9: memref<8x128xf32, #tpu.memory_space<vmem>>, %arg10: memref<32x384xf32, #tpu.memory_space<vmem>>, %arg11: memref<32x128xf32, #tpu.memory_space<vmem>>) attributes {dimension_semantics = [#tpu.dimension_semantics<arbitrary>], iteration_bounds = array<i64: 2>, scalar_prefetch = 0 : i64, scratch_operands = 3 : i64, tpu.core_type = #tpu.core_type<tc>, window_params = [{transform_indices = @transform_0, window_bounds = array<i64: 32, 16>}, {pipeline_mode = #tpu.pipeline_mode<synchronous>, transform_indices = @transform_1, window_bounds = array<i64: 16, 384>}, {pipeline_mode = #tpu.pipeline_mode<synchronous>, transform_indices = @transform_2, window_bounds = array<i64: 1, 384>}, {pipeline_mode = #tpu.pipeline_mode<synchronous>, transform_indices = @transform_3, window_bounds = array<i64: 128, 384>}, {pipeline_mode = #tpu.pipeline_mode<synchronous>, transform_indices = @transform_4, window_bounds = array<i64: 1, 128>}, {pipeline_mode = #tpu.pipeline_mode<synchronous>, transform_indices = @transform_5, window_bounds = array<i64: 128, 16>}, {pipeline_mode = #tpu.pipeline_mode<synchronous>, transform_indices = @transform_6, window_bounds = array<i64: 1, 16>}, {transform_indices = @transform_7, window_bounds = array<i64: 32, 16>}]} {
    %c0_i32 = arith.constant 0 : i32
    %0 = arith.cmpi eq, %arg0, %c0_i32 : i32
    %1 = arith.extui %0 : i1 to i32
    %c0_i32_0 = arith.constant 0 : i32
    %2 = arith.cmpi ne, %1, %c0_i32_0 : i32
    scf.if %2 {
      %cst_45 = arith.constant 0.000000e+00 : f32
      %128 = vector.broadcast %cst_45 : f32 to vector<8x128xf32>
      %c0_46 = arith.constant 0 : index
      %c0_47 = arith.constant 0 : index
      %129 = vector.load %arg9[%c0_46, %c0_47] : memref<8x128xf32, #tpu.memory_space<vmem>>, vector<8x128xf32>
      tpu.vector_store %arg9[%c0_46, %c0_47], %128 {strides = array<i32>} : memref<8x128xf32, #tpu.memory_space<vmem>>, vector<8x128xf32>,
    } else {
    }
    %c0 = arith.constant 0 : index
    %c0_1 = arith.constant 0 : index
    %3 = vector.load %arg1[%c0, %c0_1] : memref<32x16xf32, #tpu.memory_space<vmem>>, vector<32x16xf32>
    %c0_2 = arith.constant 0 : index
    %c0_3 = arith.constant 0 : index
    %4 = vector.load %arg2[%c0_2, %c0_3] : memref<16x384xf32, #tpu.memory_space<vmem>>, vector<16x384xf32>
    %cst = arith.constant dense<0.000000e+00> : vector<32x384xf32>
    %5 = tpu.matmul %3, %4, %cst {dimension_numbers = #tpu.dot_dimension_numbers<[1], [0], [0], [1], [0, 0, 1, 1], [], []>} : vector<32x16xf32>, vector<16x384xf32>, vector<32x384xf32> -> vector<32x384xf32>
    %c0_4 = arith.constant 0 : index
    %c0_5 = arith.constant 0 : index
    %6 = vector.load %arg3[%c0_4, %c0_5] : memref<1x384xf32, #tpu.memory_space<vmem>>, vector<1x384xf32>
    %7 = vector.broadcast %6 : vector<1x384xf32> to vector<32x384xf32>
    %8 = arith.addf %5, %7 : vector<32x384xf32>
    %c0_6 = arith.constant 0 : index
    %c0_7 = arith.constant 0 : index
    %9 = vector.load %arg10[%c0_6, %c0_7] : memref<32x384xf32, #tpu.memory_space<vmem>>, vector<32x384xf32>
    tpu.vector_store %arg10[%c0_6, %c0_7], %8 {strides = array<i32>} : memref<32x384xf32, #tpu.memory_space<vmem>>, vector<32x384xf32>,
    %c0_8 = arith.constant 0 : index
    %c0_9 = arith.constant 0 : index
    %10 = vector.load %arg4[%c0_8, %c0_9] : memref<128x384xf32, #tpu.memory_space<vmem>>, vector<128x384xf32>
    %c0_10 = arith.constant 0 : index
    %c0_11 = arith.constant 0 : index
    %11 = vector.load %arg5[%c0_10, %c0_11] : memref<1x128xf32, #tpu.memory_space<vmem>>, vector<1x128xf32>
    %12 = vector.shape_cast %11 : vector<1x128xf32> to vector<1x128xf32>
    %13 = vector.broadcast %12 : vector<1x128xf32> to vector<8x128xf32>
    %c0_12 = arith.constant 0 : index
    %c0_13 = arith.constant 0 : index
    %14 = vector.load %arg9[%c0_12, %c0_13] : memref<8x128xf32, #tpu.memory_space<vmem>>, vector<8x128xf32>
    %c0_i32_14 = arith.constant 0 : i32
    %c8_i32 = arith.constant 8 : i32
    %15 = arith.muli %c0_i32_14, %c8_i32 : i32
    %16 = tpu.assume_multiple %15, 8 : i32
    %17 = arith.index_cast %16 : i32 to index
    %c0_15 = arith.constant 0 : index
    %18 = vector.load %arg10[%17, %c0_15] : memref<32x384xf32, #tpu.memory_space<vmem>>, vector<8x384xf32>
    %cst_16 = arith.constant dense<0.000000e+00> : vector<8x384xf32>
    %19 = tpu.matmul %14, %10, %cst_16 {dimension_numbers = #tpu.dot_dimension_numbers<[1], [0], [0], [1], [0, 0, 1, 1], [], []>} : vector<8x128xf32>, vector<128x384xf32>, vector<8x384xf32> -> vector<8x384xf32>
    %20 = vector.extract_strided_slice %18 {offsets = [0, 0], sizes = [8, 256], strides = [1, 1]} : vector<8x384xf32> to vector<8x256xf32>
    %21 = vector.extract_strided_slice %19 {offsets = [0, 0], sizes = [8, 256], strides = [1, 1]} : vector<8x384xf32> to vector<8x256xf32>
    %22 = arith.addf %20, %21 : vector<8x256xf32>
    %23 = arith.negf %22 : vector<8x256xf32>
    %24 = math.exp %23 : vector<8x256xf32>
    %cst_17 = arith.constant 1.000000e+00 : f32
    %25 = vector.broadcast %cst_17 : f32 to vector<8x256xf32>
    %26 = arith.addf %25, %24 : vector<8x256xf32>
    %27 = arith.divf %25, %26 : vector<8x256xf32>
    %28 = vector.extract_strided_slice %27 {offsets = [0, 0], sizes = [8, 128], strides = [1, 1]} : vector<8x256xf32> to vector<8x128xf32>
    %29 = vector.extract_strided_slice %27 {offsets = [0, 128], sizes = [8, 128], strides = [1, 1]} : vector<8x256xf32> to vector<8x128xf32>
    %30 = vector.extract_strided_slice %18 {offsets = [0, 256], sizes = [8, 128], strides = [1, 1]} : vector<8x384xf32> to vector<8x128xf32>
    %31 = vector.extract_strided_slice %19 {offsets = [0, 256], sizes = [8, 128], strides = [1, 1]} : vector<8x384xf32> to vector<8x128xf32>
    %32 = arith.addf %31, %13 : vector<8x128xf32>
    %33 = arith.mulf %28, %32 : vector<8x128xf32>
    %34 = arith.addf %30, %33 : vector<8x128xf32>
    %35 = math.tanh %34 : vector<8x128xf32>
    %36 = arith.subf %14, %35 : vector<8x128xf32>
    %37 = arith.mulf %29, %36 : vector<8x128xf32>
    %38 = arith.addf %35, %37 : vector<8x128xf32>
    %39 = arith.index_cast %16 : i32 to index
    %c0_18 = arith.constant 0 : index
    %40 = vector.load %arg11[%39, %c0_18] : memref<32x128xf32, #tpu.memory_space<vmem>>, vector<8x128xf32>
    tpu.vector_store %arg11[%39, %c0_18], %38 {strides = array<i32>} : memref<32x128xf32, #tpu.memory_space<vmem>>, vector<8x128xf32>,
    %c1_i32 = arith.constant 1 : i32
    %c8_i32_19 = arith.constant 8 : i32
    %41 = arith.muli %c1_i32, %c8_i32_19 : i32
    %42 = tpu.assume_multiple %41, 8 : i32
    %43 = arith.index_cast %42 : i32 to index
    %c0_20 = arith.constant 0 : index
    %44 = vector.load %arg10[%43, %c0_20] : memref<32x384xf32, #tpu.memory_space<vmem>>, vector<8x384xf32>
    %cst_21 = arith.constant dense<0.000000e+00> : vector<8x384xf32>
    %45 = tpu.matmul %38, %10, %cst_21 {dimension_numbers = #tpu.dot_dimension_numbers<[1], [0], [0], [1], [0, 0, 1, 1], [], []>} : vector<8x128xf32>, vector<128x384xf32>, vector<8x384xf32> -> vector<8x384xf32>
    %46 = vector.extract_strided_slice %44 {offsets = [0, 0], sizes = [8, 256], strides = [1, 1]} : vector<8x384xf32> to vector<8x256xf32>
    %47 = vector.extract_strided_slice %45 {offsets = [0, 0], sizes = [8, 256], strides = [1, 1]} : vector<8x384xf32> to vector<8x256xf32>
    %48 = arith.addf %46, %47 : vector<8x256xf32>
    %49 = arith.negf %48 : vector<8x256xf32>
    %50 = math.exp %49 : vector<8x256xf32>
    %cst_22 = arith.constant 1.000000e+00 : f32
    %51 = vector.broadcast %cst_22 : f32 to vector<8x256xf32>
    %52 = arith.addf %51, %50 : vector<8x256xf32>
    %53 = arith.divf %51, %52 : vector<8x256xf32>
    %54 = vector.extract_strided_slice %53 {offsets = [0, 0], sizes = [8, 128], strides = [1, 1]} : vector<8x256xf32> to vector<8x128xf32>
    %55 = vector.extract_strided_slice %53 {offsets = [0, 128], sizes = [8, 128], strides = [1, 1]} : vector<8x256xf32> to vector<8x128xf32>
    %56 = vector.extract_strided_slice %44 {offsets = [0, 256], sizes = [8, 128], strides = [1, 1]} : vector<8x384xf32> to vector<8x128xf32>
    %57 = vector.extract_strided_slice %45 {offsets = [0, 256], sizes = [8, 128], strides = [1, 1]} : vector<8x384xf32> to vector<8x128xf32>
    %58 = arith.addf %57, %13 : vector<8x128xf32>
    %59 = arith.mulf %54, %58 : vector<8x128xf32>
    %60 = arith.addf %56, %59 : vector<8x128xf32>
    %61 = math.tanh %60 : vector<8x128xf32>
    %62 = arith.subf %38, %61 : vector<8x128xf32>
    %63 = arith.mulf %55, %62 : vector<8x128xf32>
    %64 = arith.addf %61, %63 : vector<8x128xf32>
    %65 = arith.index_cast %42 : i32 to index
    %c0_23 = arith.constant 0 : index
    %66 = vector.load %arg11[%65, %c0_23] : memref<32x128xf32, #tpu.memory_space<vmem>>, vector<8x128xf32>
    tpu.vector_store %arg11[%65, %c0_23], %64 {strides = array<i32>} : memref<32x128xf32, #tpu.memory_space<vmem>>, vector<8x128xf32>,
    %c2_i32 = arith.constant 2 : i32
    %c8_i32_24 = arith.constant 8 : i32
    %67 = arith.muli %c2_i32, %c8_i32_24 : i32
    %68 = tpu.assume_multiple %67, 8 : i32
    %69 = arith.index_cast %68 : i32 to index
    %c0_25 = arith.constant 0 : index
    %70 = vector.load %arg10[%69, %c0_25] : memref<32x384xf32, #tpu.memory_space<vmem>>, vector<8x384xf32>
    %cst_26 = arith.constant dense<0.000000e+00> : vector<8x384xf32>
    %71 = tpu.matmul %64, %10, %cst_26 {dimension_numbers = #tpu.dot_dimension_numbers<[1], [0], [0], [1], [0, 0, 1, 1], [], []>} : vector<8x128xf32>, vector<128x384xf32>, vector<8x384xf32> -> vector<8x384xf32>
    %72 = vector.extract_strided_slice %70 {offsets = [0, 0], sizes = [8, 256], strides = [1, 1]} : vector<8x384xf32> to vector<8x256xf32>
    %73 = vector.extract_strided_slice %71 {offsets = [0, 0], sizes = [8, 256], strides = [1, 1]} : vector<8x384xf32> to vector<8x256xf32>
    %74 = arith.addf %72, %73 : vector<8x256xf32>
    %75 = arith.negf %74 : vector<8x256xf32>
    %76 = math.exp %75 : vector<8x256xf32>
    %cst_27 = arith.constant 1.000000e+00 : f32
    %77 = vector.broadcast %cst_27 : f32 to vector<8x256xf32>
    %78 = arith.addf %77, %76 : vector<8x256xf32>
    %79 = arith.divf %77, %78 : vector<8x256xf32>
    %80 = vector.extract_strided_slice %79 {offsets = [0, 0], sizes = [8, 128], strides = [1, 1]} : vector<8x256xf32> to vector<8x128xf32>
    %81 = vector.extract_strided_slice %79 {offsets = [0, 128], sizes = [8, 128], strides = [1, 1]} : vector<8x256xf32> to vector<8x128xf32>
    %82 = vector.extract_strided_slice %70 {offsets = [0, 256], sizes = [8, 128], strides = [1, 1]} : vector<8x384xf32> to vector<8x128xf32>
    %83 = vector.extract_strided_slice %71 {offsets = [0, 256], sizes = [8, 128], strides = [1, 1]} : vector<8x384xf32> to vector<8x128xf32>
    %84 = arith.addf %83, %13 : vector<8x128xf32>
    %85 = arith.mulf %80, %84 : vector<8x128xf32>
    %86 = arith.addf %82, %85 : vector<8x128xf32>
    %87 = math.tanh %86 : vector<8x128xf32>
    %88 = arith.subf %64, %87 : vector<8x128xf32>
    %89 = arith.mulf %81, %88 : vector<8x128xf32>
    %90 = arith.addf %87, %89 : vector<8x128xf32>
    %91 = arith.index_cast %68 : i32 to index
    %c0_28 = arith.constant 0 : index
    %92 = vector.load %arg11[%91, %c0_28] : memref<32x128xf32, #tpu.memory_space<vmem>>, vector<8x128xf32>
    tpu.vector_store %arg11[%91, %c0_28], %90 {strides = array<i32>} : memref<32x128xf32, #tpu.memory_space<vmem>>, vector<8x128xf32>,
    %c3_i32 = arith.constant 3 : i32
    %c8_i32_29 = arith.constant 8 : i32
    %93 = arith.muli %c3_i32, %c8_i32_29 : i32
    %94 = tpu.assume_multiple %93, 8 : i32
    %95 = arith.index_cast %94 : i32 to index
    %c0_30 = arith.constant 0 : index
    %96 = vector.load %arg10[%95, %c0_30] : memref<32x384xf32, #tpu.memory_space<vmem>>, vector<8x384xf32>
    %cst_31 = arith.constant dense<0.000000e+00> : vector<8x384xf32>
    %97 = tpu.matmul %90, %10, %cst_31 {dimension_numbers = #tpu.dot_dimension_numbers<[1], [0], [0], [1], [0, 0, 1, 1], [], []>} : vector<8x128xf32>, vector<128x384xf32>, vector<8x384xf32> -> vector<8x384xf32>
    %98 = vector.extract_strided_slice %96 {offsets = [0, 0], sizes = [8, 256], strides = [1, 1]} : vector<8x384xf32> to vector<8x256xf32>
    %99 = vector.extract_strided_slice %97 {offsets = [0, 0], sizes = [8, 256], strides = [1, 1]} : vector<8x384xf32> to vector<8x256xf32>
    %100 = arith.addf %98, %99 : vector<8x256xf32>
    %101 = arith.negf %100 : vector<8x256xf32>
    %102 = math.exp %101 : vector<8x256xf32>
    %cst_32 = arith.constant 1.000000e+00 : f32
    %103 = vector.broadcast %cst_32 : f32 to vector<8x256xf32>
    %104 = arith.addf %103, %102 : vector<8x256xf32>
    %105 = arith.divf %103, %104 : vector<8x256xf32>
    %106 = vector.extract_strided_slice %105 {offsets = [0, 0], sizes = [8, 128], strides = [1, 1]} : vector<8x256xf32> to vector<8x128xf32>
    %107 = vector.extract_strided_slice %105 {offsets = [0, 128], sizes = [8, 128], strides = [1, 1]} : vector<8x256xf32> to vector<8x128xf32>
    %108 = vector.extract_strided_slice %96 {offsets = [0, 256], sizes = [8, 128], strides = [1, 1]} : vector<8x384xf32> to vector<8x128xf32>
    %109 = vector.extract_strided_slice %97 {offsets = [0, 256], sizes = [8, 128], strides = [1, 1]} : vector<8x384xf32> to vector<8x128xf32>
    %110 = arith.addf %109, %13 : vector<8x128xf32>
    %111 = arith.mulf %106, %110 : vector<8x128xf32>
    %112 = arith.addf %108, %111 : vector<8x128xf32>
    %113 = math.tanh %112 : vector<8x128xf32>
    %114 = arith.subf %90, %113 : vector<8x128xf32>
    %115 = arith.mulf %107, %114 : vector<8x128xf32>
    %116 = arith.addf %113, %115 : vector<8x128xf32>
    %117 = arith.index_cast %94 : i32 to index
    %c0_33 = arith.constant 0 : index
    %118 = vector.load %arg11[%117, %c0_33] : memref<32x128xf32, #tpu.memory_space<vmem>>, vector<8x128xf32>
    tpu.vector_store %arg11[%117, %c0_33], %116 {strides = array<i32>} : memref<32x128xf32, #tpu.memory_space<vmem>>, vector<8x128xf32>,
    %c4_i32 = arith.constant 4 : i32
    %c0_34 = arith.constant 0 : index
    %c0_35 = arith.constant 0 : index
    %119 = vector.load %arg9[%c0_34, %c0_35] : memref<8x128xf32, #tpu.memory_space<vmem>>, vector<8x128xf32>
    tpu.vector_store %arg9[%c0_34, %c0_35], %116 {strides = array<i32>} : memref<8x128xf32, #tpu.memory_space<vmem>>, vector<8x128xf32>,
    %c0_36 = arith.constant 0 : index
    %c0_37 = arith.constant 0 : index
    %120 = vector.load %arg11[%c0_36, %c0_37] : memref<32x128xf32, #tpu.memory_space<vmem>>, vector<32x128xf32>
    %c0_38 = arith.constant 0 : index
    %c0_39 = arith.constant 0 : index
    %121 = vector.load %arg6[%c0_38, %c0_39] : memref<128x16xf32, #tpu.memory_space<vmem>>, vector<128x16xf32>
    %cst_40 = arith.constant dense<0.000000e+00> : vector<32x16xf32>
    %122 = tpu.matmul %120, %121, %cst_40 {dimension_numbers = #tpu.dot_dimension_numbers<[1], [0], [0], [1], [0, 0, 1, 1], [], []>} : vector<32x128xf32>, vector<128x16xf32>, vector<32x16xf32> -> vector<32x16xf32>
    %c0_41 = arith.constant 0 : index
    %c0_42 = arith.constant 0 : index
    %123 = vector.load %arg7[%c0_41, %c0_42] : memref<1x16xf32, #tpu.memory_space<vmem>>, vector<1x16xf32>
    %124 = vector.broadcast %123 : vector<1x16xf32> to vector<32x16xf32>
    %125 = arith.addf %122, %124 : vector<32x16xf32>
    %126 = math.tanh %125 : vector<32x16xf32>
    %c0_43 = arith.constant 0 : index
    %c0_44 = arith.constant 0 : index
    %127 = vector.load %arg8[%c0_43, %c0_44] : memref<32x16xf32, #tpu.memory_space<vmem>>, vector<32x16xf32>
    tpu.vector_store %arg8[%c0_43, %c0_44], %126 {strides = array<i32>} : memref<32x16xf32, #tpu.memory_space<vmem>>, vector<32x16xf32>,
    return
  }
  func.func @transform_0(%arg0: i32) -> (i32, i32) {
    %c0_i32 = arith.constant 0 : i32
    %c0_i32_0 = arith.constant 0 : i32
    return %arg0, %c0_i32 : i32, i32
  }
  func.func @transform_1(%arg0: i32) -> (i32, i32) {
    %c0_i32 = arith.constant 0 : i32
    %c0_i32_0 = arith.constant 0 : i32
    %c0_i32_1 = arith.constant 0 : i32
    return %c0_i32, %c0_i32_0 : i32, i32
  }
  func.func @transform_2(%arg0: i32) -> (i32, i32) {
    %c0_i32 = arith.constant 0 : i32
    %c0_i32_0 = arith.constant 0 : i32
    %c0_i32_1 = arith.constant 0 : i32
    return %c0_i32, %c0_i32_0 : i32, i32
  }
  func.func @transform_3(%arg0: i32) -> (i32, i32) {
    %c0_i32 = arith.constant 0 : i32
    %c0_i32_0 = arith.constant 0 : i32
    %c0_i32_1 = arith.constant 0 : i32
    return %c0_i32, %c0_i32_0 : i32, i32
  }
  func.func @transform_4(%arg0: i32) -> (i32, i32) {
    %c0_i32 = arith.constant 0 : i32
    %c0_i32_0 = arith.constant 0 : i32
    %c0_i32_1 = arith.constant 0 : i32
    return %c0_i32, %c0_i32_0 : i32, i32
  }
  func.func @transform_5(%arg0: i32) -> (i32, i32) {
    %c0_i32 = arith.constant 0 : i32
    %c0_i32_0 = arith.constant 0 : i32
    %c0_i32_1 = arith.constant 0 : i32
    return %c0_i32, %c0_i32_0 : i32, i32
  }
  func.func @transform_6(%arg0: i32) -> (i32, i32) {
    %c0_i32 = arith.constant 0 : i32
    %c0_i32_0 = arith.constant 0 : i32
    %c0_i32_1 = arith.constant 0 : i32
    return %c0_i32, %c0_i32_0 : i32, i32
  }
  func.func @transform_7(%arg0: i32) -> (i32, i32) {
    %c0_i32 = arith.constant 0 : i32
    %c0_i32_0 = arith.constant 0 : i32
    return %arg0, %c0_i32 : i32, i32
  }
}

</mosaic_0001>

<llo_original>
// kernel: tpu_custom_call.1
$region0: #{tpu_custom_call.1}
  #allocation0 [shape = 'u32[]', space=smem, size = 0x4, offset = 0x4, fixed_abs, tag = 'smem constant byte address 0x4 - core index']
  #allocation1 [shape = 'u32[144,128]{1,0:T(1,128)}', space=vmem, size = 0x12000, scoped, tag = 'internal scratch']
  #allocation2 [shape = 'f32[8,128]{1,0:T(8,128)}', space=vmem, size = 0x1000, scoped, tag = 'scratch operand']
  #allocation3 [shape = 'f32[32,384]{1,0:T(8,128)}', space=vmem, size = 0xc000, scoped, tag = 'scratch operand']
  #allocation4 [shape = 'f32[32,128]{1,0:T(8,128)}', space=vmem, size = 0x4000, scoped, tag = 'scratch operand']
  %s0 = inlined_call_operand.vmem [shape: f32[64,16], index: 0, kind: input, shape index: {}]
  %s1 = inlined_call_operand.vmem [shape: f32[16,384], index: 1, kind: input, shape index: {}]
  %s2 = inlined_call_operand.vmem [shape: f32[1,384], index: 2, kind: input, shape index: {}]
  %s3 = inlined_call_operand.hbm [shape: f32[128,384], index: 3, kind: input, shape index: {}]
  %s4 = inlined_call_operand.vmem [shape: f32[1,128], index: 4, kind: input, shape index: {}]
  %s5 = inlined_call_operand.vmem [shape: f32[128,16], index: 5, kind: input, shape index: {}]
  %s6 = inlined_call_operand.vmem [shape: f32[1,16], index: 6, kind: input, shape index: {}]
  %s7 = inlined_call_operand.vmem [shape: f32[64,16], index: 7, kind: output, shape index: {}]
  %s8 = sld [smem:[#allocation0]]
  $region69: #{tpu_custom_call.1} parent=0
    _
  %s10 = ssub.s32 1, %s8
  %s11 = scalar_select 0, %s10, %s8
  $region1: #{tpu_custom_call.1} parent=0
    #allocation5 [shape = 'u8[196608]{0}', space=vmem, size = 0x30000, scoped, tag = 'input window, operand 3, single buffered']
    #allocation6 [shape = 's32[2]{0}', space=sflag, size = 0x8, scoped, tag = 'scoped memory for tpu_custom_call.1']
    %12 = vsyncpa [#allocation6], 0
    loop: start=0, step=1, limit=4
    $region2: #{tpu_custom_call.1} parent=1 // loop_pre_header
      _
    $region3: #{tpu_custom_call.1} parent=1 // loop_header
      %s14 = sphi 0, %s18
      %p15 = scmp.ge.s32.totalorder %s14, 4
      %s24 = sphi 0, %s26
      %s27 = sphi 0, %s24
      %s28 = sphi 0, %s27
      %s44 = sphi 0, %s28
      %s48 = sphi 0, %s48
      %s50 = sphi 0, %s48
      %s51 = sphi 0, %s50
      %s65 = sphi 0, %s51
      %s69 = sphi 0, %s69
      %s71 = sphi 0, %s69
      %s72 = sphi 0, %s71
      %s86 = sphi 0, %s72
      %s90 = sphi 0, %s90
      %s92 = sphi 0, %s90
      %s93 = sphi 0, %s92
      %s107 = sphi 0, %s93
      %s111 = sphi 0, %s111
      %s113 = sphi 0, %s111
      %s114 = sphi 0, %s113
      %s128 = sphi 0, %s114
      %s132 = sphi 0, %s132
      %s134 = sphi 0, %s132
      %s135 = sphi 0, %s134
      %s149 = sphi 0, %s135
      %s153 = sphi 0, %s153
      %s155 = sphi 0, %s153
      %s156 = sphi 0, %s155
      %s170 = sphi 0, %s156
      %s176 = sphi 0, %s178
      %s179 = sphi 0, %s176
      %s180 = sphi 0, %s179
      %s196 = sphi 0, %s180
    $region4: #{tpu_custom_call.1} parent=1 // loop_header_branch
      %17 = sbr.rel (%p15) target = $region8
    $region5: #{tpu_custom_call.1} parent=1 // loop_body
      %s19 = ssub.s32 %s14, 1
      %s20 = ssub.s32 %s14, 2
      %s21 = sadd.s32 %s14, 1
      %s22 = ssub.s32 %s14, %s21
      %p23 = scmp.eq.s32.totalorder %s22, 0
      %s25 = sadd.s32 %s24, 1
      %s26 = scalar_select %p23, %s24, %s25
      %p29 = pneg %p23
      %p30 = scmp.eq.s32.totalorder %s14, 1
      %p31 = por %p29, %p30
      %p32 = scmp.ne.s32.totalorder %s24, %s27
      %p33 = scmp.eq.s32.totalorder %s14, 0
      %p34 = por %p32, %p33
      %p35 = scmp.ne.s32.totalorder %s24, %s27
      %p36 = scmp.eq.s32.totalorder %s19, 1
      %p37 = por %p35, %p36
      %p38 = scmp.ne.s32.totalorder %s27, %s28
      %p39 = scmp.eq.s32.totalorder %s19, 0
      %p40 = por %p38, %p39
      %p41 = scmp.ne.s32.totalorder %s27, %s28
      %p42 = scmp.eq.s32.totalorder %s20, 1
      %p43 = por %p41, %p42
      %p45 = scmp.ne.s32.totalorder %s28, %s44
      %p46 = scmp.eq.s32.totalorder %s20, 0
      %p47 = por %p45, %p46
      %s49 = sadd.s32 %s48, 1
      %p52 = scmp.eq.s32.totalorder %s14, 1
      %p53 = scmp.ne.s32.totalorder %s48, %s50
      %p54 = scmp.eq.s32.totalorder %s14, 0
      %p55 = por %p53, %p54
      %p56 = scmp.ne.s32.totalorder %s48, %s50
      %p57 = scmp.eq.s32.totalorder %s19, 1
      %p58 = por %p56, %p57
      %p59 = scmp.ne.s32.totalorder %s50, %s51
      %p60 = scmp.eq.s32.totalorder %s19, 0
      %p61 = por %p59, %p60
      %p62 = scmp.ne.s32.totalorder %s50, %s51
      %p63 = scmp.eq.s32.totalorder %s20, 1
      %p64 = por %p62, %p63
      %p66 = scmp.ne.s32.totalorder %s51, %s65
      %p67 = scmp.eq.s32.totalorder %s20, 0
      %p68 = por %p66, %p67
      %s70 = sadd.s32 %s69, 1
      %p73 = scmp.eq.s32.totalorder %s14, 1
      %p74 = scmp.ne.s32.totalorder %s69, %s71
      %p75 = scmp.eq.s32.totalorder %s14, 0
      %p76 = por %p74, %p75
      %p77 = scmp.ne.s32.totalorder %s69, %s71
      %p78 = scmp.eq.s32.totalorder %s19, 1
      %p79 = por %p77, %p78
      %p80 = scmp.ne.s32.totalorder %s71, %s72
      %p81 = scmp.eq.s32.totalorder %s19, 0
      %p82 = por %p80, %p81
      %p83 = scmp.ne.s32.totalorder %s71, %s72
      %p84 = scmp.eq.s32.totalorder %s20, 1
      %p85 = por %p83, %p84
      %p87 = scmp.ne.s32.totalorder %s72, %s86
      %p88 = scmp.eq.s32.totalorder %s20, 0
      %p89 = por %p87, %p88
      %s91 = sadd.s32 %s90, 1
      %p94 = scmp.eq.s32.totalorder %s14, 1
      %p95 = scmp.ne.s32.totalorder %s90, %s92
      %p96 = scmp.eq.s32.totalorder %s14, 0
      %p97 = por %p95, %p96
      %p98 = scmp.ne.s32.totalorder %s90, %s92
      %p99 = scmp.eq.s32.totalorder %s19, 1
      %p100 = por %p98, %p99
      %p101 = scmp.ne.s32.totalorder %s92, %s93
      %p102 = scmp.eq.s32.totalorder %s19, 0
      %p103 = por %p101, %p102
      %p104 = scmp.ne.s32.totalorder %s92, %s93
      %p105 = scmp.eq.s32.totalorder %s20, 1
      %p106 = por %p104, %p105
      %p108 = scmp.ne.s32.totalorder %s93, %s107
      %p109 = scmp.eq.s32.totalorder %s20, 0
      %p110 = por %p108, %p109
      %s112 = sadd.s32 %s111, 1
      %p115 = scmp.eq.s32.totalorder %s14, 1
      %p116 = scmp.ne.s32.totalorder %s111, %s113
      %p117 = scmp.eq.s32.totalorder %s14, 0
      %p118 = por %p116, %p117
      %p119 = scmp.ne.s32.totalorder %s111, %s113
      %p120 = scmp.eq.s32.totalorder %s19, 1
      %p121 = por %p119, %p120
      %p122 = scmp.ne.s32.totalorder %s113, %s114
      %p123 = scmp.eq.s32.totalorder %s19, 0
      %p124 = por %p122, %p123
      %p125 = scmp.ne.s32.totalorder %s113, %s114
      %p126 = scmp.eq.s32.totalorder %s20, 1
      %p127 = por %p125, %p126
      %p129 = scmp.ne.s32.totalorder %s114, %s128
      %p130 = scmp.eq.s32.totalorder %s20, 0
      %p131 = por %p129, %p130
      %s133 = sadd.s32 %s132, 1
      %p136 = scmp.eq.s32.totalorder %s14, 1
      %p137 = scmp.ne.s32.totalorder %s132, %s134
      %p138 = scmp.eq.s32.totalorder %s14, 0
      %p139 = por %p137, %p138
      %p140 = scmp.ne.s32.totalorder %s132, %s134
      %p141 = scmp.eq.s32.totalorder %s19, 1
      %p142 = por %p140, %p141
      %p143 = scmp.ne.s32.totalorder %s134, %s135
      %p144 = scmp.eq.s32.totalorder %s19, 0
      %p145 = por %p143, %p144
      %p146 = scmp.ne.s32.totalorder %s134, %s135
      %p147 = scmp.eq.s32.totalorder %s20, 1
      %p148 = por %p146, %p147
      %p150 = scmp.ne.s32.totalorder %s135, %s149
      %p151 = scmp.eq.s32.totalorder %s20, 0
      %p152 = por %p150, %p151
      %s154 = sadd.s32 %s153, 1
      %p157 = scmp.eq.s32.totalorder %s14, 1
      %p158 = scmp.ne.s32.totalorder %s153, %s155
      %p159 = scmp.eq.s32.totalorder %s14, 0
      %p160 = por %p158, %p159
      %p161 = scmp.ne.s32.totalorder %s153, %s155
      %p162 = scmp.eq.s32.totalorder %s19, 1
      %p163 = por %p161, %p162
      %p164 = scmp.ne.s32.totalorder %s155, %s156
      %p165 = scmp.eq.s32.totalorder %s19, 0
      %p166 = por %p164, %p165
      %p167 = scmp.ne.s32.totalorder %s155, %s156
      %p168 = scmp.eq.s32.totalorder %s20, 1
      %p169 = por %p167, %p168
      %p171 = scmp.ne.s32.totalorder %s156, %s170
      %p172 = scmp.eq.s32.totalorder %s20, 0
      %p173 = por %p171, %p172
      %s174 = ssub.s32 %s14, %s21
      %p175 = scmp.eq.s32.totalorder %s174, 0
      %s177 = sadd.s32 %s176, 1
      %s178 = scalar_select %p175, %s176, %s177
      %p181 = pneg %p175
      %p182 = scmp.eq.s32.totalorder %s14, 1
      %p183 = por %p181, %p182
      %p184 = scmp.ne.s32.totalorder %s176, %s179
      %p185 = scmp.eq.s32.totalorder %s14, 0
      %p186 = por %p184, %p185
      %p187 = scmp.ne.s32.totalorder %s176, %s179
      %p188 = scmp.eq.s32.totalorder %s19, 1
      %p189 = por %p187, %p188
      %p190 = scmp.ne.s32.totalorder %s179, %s180
      %p191 = scmp.eq.s32.totalorder %s19, 0
      %p192 = por %p190, %p191
      %p193 = scmp.ne.s32.totalorder %s179, %s180
      %p194 = scmp.eq.s32.totalorder %s20, 1
      %p195 = por %p193, %p194
      %p197 = scmp.ne.s32.totalorder %s180, %s196
      %p198 = scmp.eq.s32.totalorder %s20, 0
      %p199 = por %p197, %p198
      %p200 = scmp.le.s32.totalorder 1, %s14
      %p201 = scmp.lt.s32.totalorder %s14, 3
      %p202 = pnand %p200, %p201
      %p203 = pneg %p202
      // Predicated region
      $region9: #{tpu_custom_call.1} parent=5 // pred_check
        _
      $region10: #{tpu_custom_call.1} parent=5 // pred_check_branch
        %205 = sbr.rel (%p202) target = $region12
      $region11: #{tpu_custom_call.1} parent=5 // pred_region
        %s206 = ssub.s32 %s14, 1
        // Predicated region
        $region13: #{tpu_custom_call.1} parent=11 // pred_check
          %p207 = pneg %p61
        $region14: #{tpu_custom_call.1} parent=11 // pred_check_branch
          %209 = sbr.rel (%p207) target = $region16
        $region15: #{tpu_custom_call.1} parent=11 // pred_region
          _
        $region16: #{tpu_custom_call.1} parent=11 // pred_fallthru
          _
        // Predicated region
        $region17: #{tpu_custom_call.1} parent=11 // pred_check
          %p210 = pneg %p82
        $region18: #{tpu_custom_call.1} parent=11 // pred_check_branch
          %212 = sbr.rel (%p210) target = $region20
        $region19: #{tpu_custom_call.1} parent=11 // pred_region
          _
        $region20: #{tpu_custom_call.1} parent=11 // pred_fallthru
          _
        // Predicated region
        $region21: #{tpu_custom_call.1} parent=11 // pred_check
          %p213 = pneg %p103
        $region22: #{tpu_custom_call.1} parent=11 // pred_check_branch
          %215 = sbr.rel (%p213) target = $region24
        $region23: #{tpu_custom_call.1} parent=11 // pred_region
          %s217 = ssub.s32 6144, 6144
          %218 = vsyncadd [#allocation6], %s217
          %s219 = sshll.u32 [#allocation5], 4
          %s220 = int_to_ptr.vmem [resolvable:$true] %s219
          %225 = dma.hbm_to_vmem [thread:$0]  %s3, 6144, %s220, [#allocation6], 384, 384, 24
        $region24: #{tpu_custom_call.1} parent=11 // pred_fallthru
          _
        // Predicated region
        $region25: #{tpu_custom_call.1} parent=11 // pred_check
          %p226 = pneg %p124
        $region26: #{tpu_custom_call.1} parent=11 // pred_check_branch
          %228 = sbr.rel (%p226) target = $region28
        $region27: #{tpu_custom_call.1} parent=11 // pred_region
          _
        $region28: #{tpu_custom_call.1} parent=11 // pred_fallthru
          _
        // Predicated region
        $region29: #{tpu_custom_call.1} parent=11 // pred_check
          %p229 = pneg %p145
        $region30: #{tpu_custom_call.1} parent=11 // pred_check_branch
          %231 = sbr.rel (%p229) target = $region32
        $region31: #{tpu_custom_call.1} parent=11 // pred_region
          _
        $region32: #{tpu_custom_call.1} parent=11 // pred_fallthru
          _
        // Predicated region
        $region33: #{tpu_custom_call.1} parent=11 // pred_check
          %p232 = pneg %p166
        $region34: #{tpu_custom_call.1} parent=11 // pred_check_branch
          %234 = sbr.rel (%p232) target = $region36
        $region35: #{tpu_custom_call.1} parent=11 // pred_region
          _
        $region36: #{tpu_custom_call.1} parent=11 // pred_fallthru
          _
      $region12: #{tpu_custom_call.1} parent=5 // pred_fallthru
        _
      %p235 = scmp.lt.s32.totalorder %s14, 2
      // Predicated region
      $region37: #{tpu_custom_call.1} parent=5 // pred_check
        %p236 = pneg %p235
      $region38: #{tpu_custom_call.1} parent=5 // pred_check_branch
        %238 = sbr.rel (%p236) target = $region40
      $region39: #{tpu_custom_call.1} parent=5 // pred_region
        // Predicated region
        $region41: #{tpu_custom_call.1} parent=39 // pred_check
          %p239 = pneg %p34
        $region42: #{tpu_custom_call.1} parent=39 // pred_check_branch
          %241 = sbr.rel (%p239) target = $region44
        $region43: #{tpu_custom_call.1} parent=39 // pred_region
          %s242 = smul.u32 4, %s14
          %p243 = scmp.lt.s32.totalorder %s242, 7
          %s244 = scalar_select %p243, %s242, 7
          %s245 = smul.addr %s244, 8
          %s246 = scalar_lea.vmem %s0, %s245
          %s247 = smul.u32 4, %s14
        $region44: #{tpu_custom_call.1} parent=39 // pred_fallthru
          _
      $region40: #{tpu_custom_call.1} parent=5 // pred_fallthru
        _
      %p248 = scmp.le.s32.totalorder 1, %s14
      %p249 = scmp.lt.s32.totalorder %s14, 3
      %p250 = pnand %p248, %p249
      %p251 = pneg %p250
      // Predicated region
      $region45: #{tpu_custom_call.1} parent=5 // pred_check
        _
      $region46: #{tpu_custom_call.1} parent=5 // pred_check_branch
        %253 = sbr.rel (%p250) target = $region48
      $region47: #{tpu_custom_call.1} parent=5 // pred_region
        %s254 = ssub.s32 %s14, 1
        // Predicated region
        $region49: #{tpu_custom_call.1} parent=47 // pred_check
          %p255 = pneg %p103
        $region50: #{tpu_custom_call.1} parent=47 // pred_check_branch
          %257 = sbr.rel (%p255) target = $region52
        $region51: #{tpu_custom_call.1} parent=47 // pred_region
          %258 = dma.done [#allocation6], 6144
        $region52: #{tpu_custom_call.1} parent=47 // pred_fallthru
          _
        %s259 = smul.u32 4, %s19
        %p260 = scmp.lt.s32.totalorder %s259, 7
        %s261 = scalar_select %p260, %s259, 7
        %s262 = smul.addr %s261, 8
        %s263 = scalar_lea.vmem %s0, %s262
        %p264 = pneg %p40
        %p265 = pneg %p37
        %p266 = pneg %p61
        %p267 = pneg %p58
        %p268 = pneg %p82
        %p269 = pneg %p79
        %p270 = pneg %p103
        %p271 = pneg %p100
        %p272 = pneg %p124
        %p273 = pneg %p121
        %p274 = pneg %p145
        %p275 = pneg %p142
        %p276 = pneg %p166
        %p277 = pneg %p163
        %p278 = pneg %p192
        %p279 = pneg %p189
        %s280 = smul.u32 4, %s19
        %p281 = scmp.lt.s32.totalorder %s280, 7
        %s282 = scalar_select %p281, %s280, 7
        %s283 = smul.addr %s282, 8
        %s284 = scalar_lea.vmem %s7, %s283
        %s285 = smul.u32 4, %s19
        %p286 = scmp.lt.s32.totalorder %s285, 7
        %s287 = scalar_select %p286, %s285, 7
        %s288 = smul.addr %s287, 8
        %s289 = scalar_lea.vmem %s0, %s288
        %s290 = smul.u32 4, %s19
        %s291 = smul.u32 4, %s19
        %p292 = scmp.lt.s32.totalorder %s291, 7
        %s293 = scalar_select %p292, %s291, 7
        %s294 = smul.addr %s293, 8
        %s295 = scalar_lea.vmem %s7, %s294
        %s296 = smul.u32 4, %s19
        %p297 = scmp.eq.s32.totalorder %s19, 0
        // Predicated region
        $region53: #{tpu_custom_call.1} parent=47 // pred_check
          %p298 = pneg %p297
        $region54: #{tpu_custom_call.1} parent=47 // pred_check_branch
          %300 = sbr.rel (%p298) target = $region56
        $region55: #{tpu_custom_call.1} parent=47 // pred_region
          %301 = vst [vmem:[#allocation2] sm:$0xff] 0.0
        $region56: #{tpu_custom_call.1} parent=47 // pred_fallthru
          _
        %v302 = vld [vmem:[%s289] sm:$0xff]
        %v303 = vld [vmem:[%s289 + $0x8] sm:$0xff]
        %v304 = vld [vmem:[%s289 + $0x10] sm:$0xff]
        %v305 = vld [vmem:[%s289 + $0x18] sm:$0xff]
        %v306 = vld [vmem:[%s1] sm:$0xff]
        %v307 = vld [vmem:[%s1 + $0x8] sm:$0xff]
        %v308 = vld [vmem:[%s1 + $0x10] sm:$0xff]
        %v309 = vld [vmem:[%s1 + $0x18] sm:$0xff]
        %v310 = vld [vmem:[%s1 + $0x20] sm:$0xff]
        %v311 = vld [vmem:[%s1 + $0x28] sm:$0xff]
        %v312 = vld [vmem:[%s2] sm:$0x7]
        %v314 = vlaneseq
        %v315 = vshrl.u32 %v314, 7
        %v316 = vsub.s32 0, %v315
        %v317 = vrot.slane %v312, %v316
        %v318 = vlaneseq
        %v319 = vshrl.u32 %v318, 7
        %v320 = vsub.s32 1, %v319
        %v321 = vrot.slane %v312, %v320
        %v322 = vlaneseq
        %v323 = vshrl.u32 %v322, 7
        %v324 = vsub.s32 2, %v323
        %v325 = vrot.slane %v312, %v324
        %vm329 = vcmask 130048
        %v331 = vsel %vm329, %v302, 0
        %v334 = vsel %vm329, %v303, 0
        %v337 = vsel %vm329, %v304, 0
        %v340 = vsel %vm329, %v305, 0
        %342 = vmatprep.subr.mxu0 %v307
        %343 = vmatpush1.msra.mxu0 %v306
        %344 = vmatprep.subr.mxu0 %v310
        %345 = vmatpush1.msra.mxu0 %v309
        %346 = vmatprep.subr.mxu0 0.0
        %347 = vmatpush1.msra.mxu0 0.0
        %348 = vmatprep.subr.mxu0 0.0
        %349 = vmatpush1.msra.mxu0 0.0
        %350 = vmatprep.subr.mxu0 0.0
        %351 = vmatpush1.msra.mxu0 0.0
        %352 = vmatprep.subr.mxu0 0.0
        %353 = vmatpush1.msra.mxu0 0.0
        %354 = vmatprep.subr.mxu0 0.0
        %355 = vmatpush1.msra.mxu0 0.0
        %356 = vmatprep.subr.mxu0 0.0
        %357 = vmatpush1.msra.mxu0 0.0
        %358 = vmatprep.subr.mxu0 0.0
        %359 = vmatpush1.msra.mxu0 0.0
        %360 = vmatprep.subr.mxu0 0.0
        %361 = vmatpush1.msra.mxu0 0.0
        %362 = vmatprep.subr.mxu0 0.0
        %363 = vmatpush1.msra.mxu0 0.0
        %364 = vmatprep.subr.mxu0 0.0
        %365 = vmatpush1.msra.mxu0 0.0
        %366 = vmatprep.subr.mxu0 0.0
        %367 = vmatpush1.msra.mxu0 0.0
        %368 = vmatprep.subr.mxu0 0.0
        %369 = vmatpush1.msra.mxu0 0.0
        %370 = vmatprep.subr.mxu0 0.0
        %371 = vmatpush1.msra.mxu0 0.0
        %372 = vmatprep.subr.mxu0 0.0
        %373 = vmatpush1.msra.mxu0 0.0
        %374 = vmatprep.subr.mxu0 0.0
        %375 = vmatpush1.msra.mxu0 0.0
        %376 = vmatprep.subr.mxu0 0.0
        %377 = vmatpush1.msra.mxu0 0.0
        %378 = vmatprep.subr.mxu0 0.0
        %379 = vmatpush1.msra.mxu0 0.0
        %380 = vmatprep.subr.mxu0 0.0
        %381 = vmatpush1.msra.mxu0 0.0
        %382 = vmatprep.subr.mxu0 0.0
        %383 = vmatpush1.msra.mxu0 0.0
        %384 = vmatprep.subr.mxu0 0.0
        %385 = vmatpush1.msra.mxu0 0.0
        %386 = vmatprep.subr.mxu0 0.0
        %387 = vmatpush1.msra.mxu0 0.0
        %388 = vmatprep.subr.mxu0 0.0
        %389 = vmatpush1.msra.mxu0 0.0
        %390 = vmatprep.subr.mxu0 0.0
        %391 = vmatpush1.msra.mxu0 0.0
        %392 = vmatprep.subr.mxu0 0.0
        %393 = vmatpush1.msra.mxu0 0.0
        %394 = vmatprep.subr.mxu0 0.0
        %395 = vmatpush1.msra.mxu0 0.0
        %396 = vmatprep.subr.mxu0 0.0
        %397 = vmatpush1.msra.mxu0 0.0
        %398 = vmatprep.subr.mxu0 0.0
        %399 = vmatpush1.msra.mxu0 0.0
        %400 = vmatprep.subr.mxu0 0.0
        %401 = vmatpush1.msra.mxu0 0.0
        %402 = vmatprep.subr.mxu0 0.0
        %403 = vmatpush1.msra.mxu0 0.0
        %404 = vmatprep.subr.mxu0 0.0
        %405 = vmatpush1.msra.mxu0 0.0
        %406 = vmatprep.mubr.f32.mxu0 0.0
        %407 = vmatmul.mubr.f32.gmra.mrb[0].mxu0 %v331
        %v408 = vpop.f32.mrb[0].mxu0
        %v409 = vadd.f32 %v317, %v408
        %v410 = vpop.f32.mrb[0].mxu0
        %v411 = vadd.f32 %v321, %v410
        %412 = vmatprep.mubr.f32.mxu0 0.0
        %413 = vmatmul.mubr.f32.gmra.mrb[0].mxu0 %v334
        %v414 = vpop.f32.mrb[0].mxu0
        %v415 = vadd.f32 %v317, %v414
        %v416 = vpop.f32.mrb[0].mxu0
        %v417 = vadd.f32 %v321, %v416
        %418 = vmatprep.mubr.f32.mxu0 0.0
        %419 = vmatmul.mubr.f32.gmra.mrb[0].mxu0 %v337
        %v420 = vpop.f32.mrb[0].mxu0
        %v421 = vadd.f32 %v317, %v420
        %v422 = vpop.f32.mrb[0].mxu0
        %v423 = vadd.f32 %v321, %v422
        %424 = vmatprep.mubr.f32.mxu0 0.0
        %425 = vmatmul.mubr.f32.gmra.mrb[0].mxu0 %v340
        %v426 = vpop.f32.mrb[0].mxu0
        %v427 = vadd.f32 %v317, %v426
        %v428 = vpop.f32.mrb[0].mxu0
        %v429 = vadd.f32 %v321, %v428
        %430 = vdwg.mxu0
        %431 = vmatprep.subr.mxu0 0.0
        %432 = vmatpush1.msra.mxu0 %v308
        %433 = vmatprep.subr.mxu0 0.0
        %434 = vmatpush1.msra.mxu0 %v311
        %435 = vmatprep.subr.mxu0 0.0
        %436 = vmatpush1.msra.mxu0 0.0
        %437 = vmatprep.subr.mxu0 0.0
        %438 = vmatpush1.msra.mxu0 0.0
        %439 = vmatprep.subr.mxu0 0.0
        %440 = vmatpush1.msra.mxu0 0.0
        %441 = vmatprep.subr.mxu0 0.0
        %442 = vmatpush1.msra.mxu0 0.0
        %443 = vmatprep.subr.mxu0 0.0
        %444 = vmatpush1.msra.mxu0 0.0
        %445 = vmatprep.subr.mxu0 0.0
        %446 = vmatpush1.msra.mxu0 0.0
        %447 = vmatprep.subr.mxu0 0.0
        %448 = vmatpush1.msra.mxu0 0.0
        %449 = vmatprep.subr.mxu0 0.0
        %450 = vmatpush1.msra.mxu0 0.0
        %451 = vmatprep.subr.mxu0 0.0
        %452 = vmatpush1.msra.mxu0 0.0
        %453 = vmatprep.subr.mxu0 0.0
        %454 = vmatpush1.msra.mxu0 0.0
        %455 = vmatprep.subr.mxu0 0.0
        %456 = vmatpush1.msra.mxu0 0.0
        %457 = vmatprep.subr.mxu0 0.0
        %458 = vmatpush1.msra.mxu0 0.0
        %459 = vmatprep.subr.mxu0 0.0
        %460 = vmatpush1.msra.mxu0 0.0
        %461 = vmatprep.subr.mxu0 0.0
        %462 = vmatpush1.msra.mxu0 0.0
        %463 = vmatprep.subr.mxu0 0.0
        %464 = vmatpush1.msra.mxu0 0.0
        %465 = vmatprep.subr.mxu0 0.0
        %466 = vmatpush1.msra.mxu0 0.0
        %467 = vmatprep.subr.mxu0 0.0
        %468 = vmatpush1.msra.mxu0 0.0
        %469 = vmatprep.subr.mxu0 0.0
        %470 = vmatpush1.msra.mxu0 0.0
        %471 = vmatprep.subr.mxu0 0.0
        %472 = vmatpush1.msra.mxu0 0.0
        %473 = vmatprep.subr.mxu0 0.0
        %474 = vmatpush1.msra.mxu0 0.0
        %475 = vmatprep.subr.mxu0 0.0
        %476 = vmatpush1.msra.mxu0 0.0
        %477 = vmatprep.subr.mxu0 0.0
        %478 = vmatpush1.msra.mxu0 0.0
        %479 = vmatprep.subr.mxu0 0.0
        %480 = vmatpush1.msra.mxu0 0.0
        %481 = vmatprep.subr.mxu0 0.0
        %482 = vmatpush1.msra.mxu0 0.0
        %483 = vmatprep.subr.mxu0 0.0
        %484 = vmatpush1.msra.mxu0 0.0
        %485 = vmatprep.subr.mxu0 0.0
        %486 = vmatpush1.msra.mxu0 0.0
        %487 = vmatprep.subr.mxu0 0.0
        %488 = vmatpush1.msra.mxu0 0.0
        %489 = vmatprep.subr.mxu0 0.0
        %490 = vmatpush1.msra.mxu0 0.0
        %491 = vmatprep.subr.mxu0 0.0
        %492 = vmatpush1.msra.mxu0 0.0
        %493 = vmatprep.subr.mxu0 0.0
        %494 = vmatpush1.msra.mxu0 0.0
        %495 = vmatprep.mubr.f32.mxu0 0.0
        %496 = vmatmul.mubr.f32.gmra.mrb[0].mxu0 %v331
        %v497 = vpop.f32.mrb[0].mxu0
        %v498 = vadd.f32 %v325, %v497
        %v499 = vpop.f32.mrb[0].mxu0
        %500 = vmatprep.mubr.f32.mxu0 0.0
        %501 = vmatmul.mubr.f32.gmra.mrb[0].mxu0 %v334
        %v502 = vpop.f32.mrb[0].mxu0
        %v503 = vadd.f32 %v325, %v502
        %v504 = vpop.f32.mrb[0].mxu0
        %505 = vmatprep.mubr.f32.mxu0 0.0
        %506 = vmatmul.mubr.f32.gmra.mrb[0].mxu0 %v337
        %v507 = vpop.f32.mrb[0].mxu0
        %v508 = vadd.f32 %v325, %v507
        %v509 = vpop.f32.mrb[0].mxu0
        %510 = vmatprep.mubr.f32.mxu0 0.0
        %511 = vmatmul.mubr.f32.gmra.mrb[0].mxu0 %v340
        %v512 = vpop.f32.mrb[0].mxu0
        %v513 = vadd.f32 %v325, %v512
        %v514 = vpop.f32.mrb[0].mxu0
        %515 = vdwg.mxu0
        %516 = vst [vmem:[#allocation3] sm:$0xff] %v409
        %517 = vst [vmem:[#allocation3 + $0x8] sm:$0xff] %v411
        %518 = vst [vmem:[#allocation3 + $0x10] sm:$0xff] %v498
        %519 = vst [vmem:[#allocation3 + $0x18] sm:$0xff] %v415
        %520 = vst [vmem:[#allocation3 + $0x20] sm:$0xff] %v417
        %521 = vst [vmem:[#allocation3 + $0x28] sm:$0xff] %v503
        %522 = vst [vmem:[#allocation3 + $0x30] sm:$0xff] %v421
        %523 = vst [vmem:[#allocation3 + $0x38] sm:$0xff] %v423
        %524 = vst [vmem:[#allocation3 + $0x40] sm:$0xff] %v508
        %525 = vst [vmem:[#allocation3 + $0x48] sm:$0xff] %v427
        %526 = vst [vmem:[#allocation3 + $0x50] sm:$0xff] %v429
        %527 = vst [vmem:[#allocation3 + $0x58] sm:$0xff] %v513
        %v528 = vld [vmem:[#allocation5] sm:$0xff]
        %v529 = vld [vmem:[#allocation5 + $0x8] sm:$0xff]
        %v530 = vld [vmem:[#allocation5 + $0x10] sm:$0xff]
        %v531 = vld [vmem:[#allocation5 + $0x18] sm:$0xff]
        %v532 = vld [vmem:[#allocation5 + $0x20] sm:$0xff]
        %v533 = vld [vmem:[#allocation5 + $0x28] sm:$0xff]
        %v534 = vld [vmem:[#allocation5 + $0x30] sm:$0xff]
        %v535 = vld [vmem:[#allocation5 + $0x38] sm:$0xff]
        %v536 = vld [vmem:[#allocation5 + $0x40] sm:$0xff]
        %v537 = vld [vmem:[#allocation5 + $0x48] sm:$0xff]
        %v538 = vld [vmem:[#allocation5 + $0x50] sm:$0xff]
        %v539 = vld [vmem:[#allocation5 + $0x58] sm:$0xff]
        %v540 = vld [vmem:[#allocation5 + $0x60] sm:$0xff]
        %v541 = vld [vmem:[#allocation5 + $0x68] sm:$0xff]
        %v542 = vld [vmem:[#allocation5 + $0x70] sm:$0xff]
        %v543 = vld [vmem:[#allocation5 + $0x78] sm:$0xff]
        %v544 = vld [vmem:[#allocation5 + $0x80] sm:$0xff]
        %v545 = vld [vmem:[#allocation5 + $0x88] sm:$0xff]
        %v546 = vld [vmem:[#allocation5 + $0x90] sm:$0xff]
        %v547 = vld [vmem:[#allocation5 + $0x98] sm:$0xff]
        %v548 = vld [vmem:[#allocation5 + $0xa0] sm:$0xff]
        %v549 = vld [vmem:[#allocation5 + $0xa8] sm:$0xff]
        %v550 = vld [vmem:[#allocation5 + $0xb0] sm:$0xff]
        %v551 = vld [vmem:[#allocation5 + $0xb8] sm:$0xff]
        %v552 = vld [vmem:[#allocation5 + $0xc0] sm:$0xff]
        %v553 = vld [vmem:[#allocation5 + $0xc8] sm:$0xff]
        %v554 = vld [vmem:[#allocation5 + $0xd0] sm:$0xff]
        %v555 = vld [vmem:[#allocation5 + $0xd8] sm:$0xff]
        %v556 = vld [vmem:[#allocation5 + $0xe0] sm:$0xff]
        %v557 = vld [vmem:[#allocation5 + $0xe8] sm:$0xff]
        %v558 = vld [vmem:[#allocation5 + $0xf0] sm:$0xff]
        %v559 = vld [vmem:[#allocation5 + $0xf8] sm:$0xff]
        %v560 = vld [vmem:[#allocation5 + $0x100] sm:$0xff]
        %v561 = vld [vmem:[#allocation5 + $0x108] sm:$0xff]
        %v562 = vld [vmem:[#allocation5 + $0x110] sm:$0xff]
        %v563 = vld [vmem:[#allocation5 + $0x118] sm:$0xff]
        %v564 = vld [vmem:[#allocation5 + $0x120] sm:$0xff]
        %v565 = vld [vmem:[#allocation5 + $0x128] sm:$0xff]
        %v566 = vld [vmem:[#allocation5 + $0x130] sm:$0xff]
        %v567 = vld [vmem:[#allocation5 + $0x138] sm:$0xff]
        %v568 = vld [vmem:[#allocation5 + $0x140] sm:$0xff]
        %v569 = vld [vmem:[#allocation5 + $0x148] sm:$0xff]
        %v570 = vld [vmem:[#allocation5 + $0x150] sm:$0xff]
        %v571 = vld [vmem:[#allocation5 + $0x158] sm:$0xff]
        %v572 = vld [vmem:[#allocation5 + $0x160] sm:$0xff]
        %v573 = vld [vmem:[#allocation5 + $0x168] sm:$0xff]
        %v574 = vld [vmem:[#allocation5 + $0x170] sm:$0xff]
        %v575 = vld [vmem:[#allocation5 + $0x178] sm:$0xff]
        %v576 = vld [vmem:[%s4] sm:$0x1]
        %v578 = vlaneseq
        %v579 = vshrl.u32 %v578, 7
        %v580 = vsub.s32 0, %v579
        %v581 = vrot.slane %v576, %v580
        %v583 = vld [vmem:[#allocation2] sm:$0xff]
        %s584 = smul.u32 0, 3
        %s585 = smul.addr %s584, 8
        %s586 = scalar_lea.vmem [#allocation3], %s585
        %v587 = vld [vmem:[%s586] sm:$0xff]
        %v588 = vld [vmem:[%s586 + $0x8] sm:$0xff]
        %v589 = vld [vmem:[%s586 + $0x10] sm:$0xff]
        %590 = vmatprep.subr.mxu0 %v529
        %591 = vmatpush1.msra.mxu0 %v528
        %592 = vmatprep.subr.mxu0 %v532
        %593 = vmatpush1.msra.mxu0 %v531
        %594 = vmatprep.subr.mxu0 %v535
        %595 = vmatpush1.msra.mxu0 %v534
        %596 = vmatprep.subr.mxu0 %v538
        %597 = vmatpush1.msra.mxu0 %v537
        %598 = vmatprep.subr.mxu0 %v541
        %599 = vmatpush1.msra.mxu0 %v540
        %600 = vmatprep.subr.mxu0 %v544
        %601 = vmatpush1.msra.mxu0 %v543
        %602 = vmatprep.subr.mxu0 %v547
        %603 = vmatpush1.msra.mxu0 %v546
        %604 = vmatprep.subr.mxu0 %v550
        %605 = vmatpush1.msra.mxu0 %v549
        %606 = vmatprep.subr.mxu0 %v553
        %607 = vmatpush1.msra.mxu0 %v552
        %608 = vmatprep.subr.mxu0 %v556
        %609 = vmatpush1.msra.mxu0 %v555
        %610 = vmatprep.subr.mxu0 %v559
        %611 = vmatpush1.msra.mxu0 %v558
        %612 = vmatprep.subr.mxu0 %v562
        %613 = vmatpush1.msra.mxu0 %v561
        %614 = vmatprep.subr.mxu0 %v565
        %615 = vmatpush1.msra.mxu0 %v564
        %616 = vmatprep.subr.mxu0 %v568
        %617 = vmatpush1.msra.mxu0 %v567
        %618 = vmatprep.subr.mxu0 %v571
        %619 = vmatpush1.msra.mxu0 %v570
        %620 = vmatprep.subr.mxu0 %v574
        %621 = vmatpush1.msra.mxu0 %v573
        %622 = vmatprep.subr.mxu0 0.0
        %623 = vmatpush1.msra.mxu0 0.0
        %624 = vmatprep.subr.mxu0 0.0
        %625 = vmatpush1.msra.mxu0 0.0
        %626 = vmatprep.subr.mxu0 0.0
        %627 = vmatpush1.msra.mxu0 0.0
        %628 = vmatprep.subr.mxu0 0.0
        %629 = vmatpush1.msra.mxu0 0.0
        %630 = vmatprep.subr.mxu0 0.0
        %631 = vmatpush1.msra.mxu0 0.0
        %632 = vmatprep.subr.mxu0 0.0
        %633 = vmatpush1.msra.mxu0 0.0
        %634 = vmatprep.subr.mxu0 0.0
        %635 = vmatpush1.msra.mxu0 0.0
        %636 = vmatprep.subr.mxu0 0.0
        %637 = vmatpush1.msra.mxu0 0.0
        %638 = vmatprep.subr.mxu0 0.0
        %639 = vmatpush1.msra.mxu0 0.0
        %640 = vmatprep.subr.mxu0 0.0
        %641 = vmatpush1.msra.mxu0 0.0
        %642 = vmatprep.subr.mxu0 0.0
        %643 = vmatpush1.msra.mxu0 0.0
        %644 = vmatprep.subr.mxu0 0.0
        %645 = vmatpush1.msra.mxu0 0.0
        %646 = vmatprep.subr.mxu0 0.0
        %647 = vmatpush1.msra.mxu0 0.0
        %648 = vmatprep.subr.mxu0 0.0
        %649 = vmatpush1.msra.mxu0 0.0
        %650 = vmatprep.subr.mxu0 0.0
        %651 = vmatpush1.msra.mxu0 0.0
        %652 = vmatprep.subr.mxu0 0.0
        %653 = vmatpush1.msra.mxu0 0.0
        %654 = vmatprep.mubr.f32.mxu0 0.0
        %655 = vmatmul.mubr.f32.gmra.mrb[0].mxu0 %v583
        %v656 = vpop.f32.mrb[0].mxu0
        %v657 = vadd.f32 0.0, %v656
        %v658 = vpop.f32.mrb[0].mxu0
        %v659 = vadd.f32 0.0, %v658
        %660 = vdwg.mxu0
        %661 = vmatprep.subr.mxu0 0.0
        %662 = vmatpush1.msra.mxu0 %v530
        %663 = vmatprep.subr.mxu0 0.0
        %664 = vmatpush1.msra.mxu0 %v533
        %665 = vmatprep.subr.mxu0 0.0
        %666 = vmatpush1.msra.mxu0 %v536
        %667 = vmatprep.subr.mxu0 0.0
        %668 = vmatpush1.msra.mxu0 %v539
        %669 = vmatprep.subr.mxu0 0.0
        %670 = vmatpush1.msra.mxu0 %v542
        %671 = vmatprep.subr.mxu0 0.0
        %672 = vmatpush1.msra.mxu0 %v545
        %673 = vmatprep.subr.mxu0 0.0
        %674 = vmatpush1.msra.mxu0 %v548
        %675 = vmatprep.subr.mxu0 0.0
        %676 = vmatpush1.msra.mxu0 %v551
        %677 = vmatprep.subr.mxu0 0.0
        %678 = vmatpush1.msra.mxu0 %v554
        %679 = vmatprep.subr.mxu0 0.0
        %680 = vmatpush1.msra.mxu0 %v557
        %681 = vmatprep.subr.mxu0 0.0
        %682 = vmatpush1.msra.mxu0 %v560
        %683 = vmatprep.subr.mxu0 0.0
        %684 = vmatpush1.msra.mxu0 %v563
        %685 = vmatprep.subr.mxu0 0.0
        %686 = vmatpush1.msra.mxu0 %v566
        %687 = vmatprep.subr.mxu0 0.0
        %688 = vmatpush1.msra.mxu0 %v569
        %689 = vmatprep.subr.mxu0 0.0
        %690 = vmatpush1.msra.mxu0 %v572
        %691 = vmatprep.subr.mxu0 0.0
        %692 = vmatpush1.msra.mxu0 %v575
        %693 = vmatprep.subr.mxu0 0.0
        %694 = vmatpush1.msra.mxu0 0.0
        %695 = vmatprep.subr.mxu0 0.0
        %696 = vmatpush1.msra.mxu0 0.0
        %697 = vmatprep.subr.mxu0 0.0
        %698 = vmatpush1.msra.mxu0 0.0
        %699 = vmatprep.subr.mxu0 0.0
        %700 = vmatpush1.msra.mxu0 0.0
        %701 = vmatprep.subr.mxu0 0.0
        %702 = vmatpush1.msra.mxu0 0.0
        %703 = vmatprep.subr.mxu0 0.0
        %704 = vmatpush1.msra.mxu0 0.0
        %705 = vmatprep.subr.mxu0 0.0
        %706 = vmatpush1.msra.mxu0 0.0
        %707 = vmatprep.subr.mxu0 0.0
        %708 = vmatpush1.msra.mxu0 0.0
        %709 = vmatprep.subr.mxu0 0.0
        %710 = vmatpush1.msra.mxu0 0.0
        %711 = vmatprep.subr.mxu0 0.0
        %712 = vmatpush1.msra.mxu0 0.0
        %713 = vmatprep.subr.mxu0 0.0
        %714 = vmatpush1.msra.mxu0 0.0
        %715 = vmatprep.subr.mxu0 0.0
        %716 = vmatpush1.msra.mxu0 0.0
        %717 = vmatprep.subr.mxu0 0.0
        %718 = vmatpush1.msra.mxu0 0.0
        %719 = vmatprep.subr.mxu0 0.0
        %720 = vmatpush1.msra.mxu0 0.0
        %721 = vmatprep.subr.mxu0 0.0
        %722 = vmatpush1.msra.mxu0 0.0
        %723 = vmatprep.subr.mxu0 0.0
        %724 = vmatpush1.msra.mxu0 0.0
        %725 = vmatprep.mubr.f32.mxu0 0.0
        %726 = vmatmul.mubr.f32.gmra.mrb[0].mxu0 %v583
        %v727 = vpop.f32.mrb[0].mxu0
        %v728 = vadd.f32 0.0, %v727
        %v729 = vpop.f32.mrb[0].mxu0
        %730 = vdwg.mxu0
        %v731 = vadd.f32 %v587, %v657
        %v732 = vadd.f32 %v588, %v659
        %v733 = vxor.u32 %v731, 2147483648
        %v734 = vxor.u32 %v732, 2147483648
        %v735 = vmul.f32 %v733, 1.442695
        %v736 = vpow.pop %v735
        %v737 = vmul.f32 %v734, 1.442695
        %v738 = vpow.pop %v737
        %v739 = vadd.f32 %v736, 1.0
        %v740 = vadd.f32 %v738, 1.0
        %v741 = vrcp.pop %v739
        %v742 = vmul.f32 1.0, %v741
        %v743 = vrcp.pop %v740
        %v744 = vmul.f32 1.0, %v743
        %v745 = vadd.f32 %v728, %v581
        %v746 = vmul.f32 %v742, %v745
        %v747 = vadd.f32 %v589, %v746
        %v748 = vtanh.pop %v747
        %v749 = vsub.f32 %v583, %v748
        %v750 = vmul.f32 %v744, %v749
        %v751 = vadd.f32 %v748, %v750
        %752 = vst [vmem:[#allocation4] sm:$0xff] %v751
        %s753 = smul.u32 1, 3
        %s754 = smul.addr %s753, 8
        %s755 = scalar_lea.vmem [#allocation3], %s754
        %v756 = vld [vmem:[%s755] sm:$0xff]
        %v757 = vld [vmem:[%s755 + $0x8] sm:$0xff]
        %v758 = vld [vmem:[%s755 + $0x10] sm:$0xff]
        %759 = vmatprep.subr.mxu0 %v529
        %760 = vmatpush1.msra.mxu0 %v528
        %761 = vmatprep.subr.mxu0 %v532
        %762 = vmatpush1.msra.mxu0 %v531
        %763 = vmatprep.subr.mxu0 %v535
        %764 = vmatpush1.msra.mxu0 %v534
        %765 = vmatprep.subr.mxu0 %v538
        %766 = vmatpush1.msra.mxu0 %v537
        %767 = vmatprep.subr.mxu0 %v541
        %768 = vmatpush1.msra.mxu0 %v540
        %769 = vmatprep.subr.mxu0 %v544
        %770 = vmatpush1.msra.mxu0 %v543
        %771 = vmatprep.subr.mxu0 %v547
        %772 = vmatpush1.msra.mxu0 %v546
        %773 = vmatprep.subr.mxu0 %v550
        %774 = vmatpush1.msra.mxu0 %v549
        %775 = vmatprep.subr.mxu0 %v553
        %776 = vmatpush1.msra.mxu0 %v552
        %777 = vmatprep.subr.mxu0 %v556
        %778 = vmatpush1.msra.mxu0 %v555
        %779 = vmatprep.subr.mxu0 %v559
        %780 = vmatpush1.msra.mxu0 %v558
        %781 = vmatprep.subr.mxu0 %v562
        %782 = vmatpush1.msra.mxu0 %v561
        %783 = vmatprep.subr.mxu0 %v565
        %784 = vmatpush1.msra.mxu0 %v564
        %785 = vmatprep.subr.mxu0 %v568
        %786 = vmatpush1.msra.mxu0 %v567
        %787 = vmatprep.subr.mxu0 %v571
        %788 = vmatpush1.msra.mxu0 %v570
        %789 = vmatprep.subr.mxu0 %v574
        %790 = vmatpush1.msra.mxu0 %v573
        %791 = vmatprep.subr.mxu0 0.0
        %792 = vmatpush1.msra.mxu0 0.0
        %793 = vmatprep.subr.mxu0 0.0
        %794 = vmatpush1.msra.mxu0 0.0
        %795 = vmatprep.subr.mxu0 0.0
        %796 = vmatpush1.msra.mxu0 0.0
        %797 = vmatprep.subr.mxu0 0.0
        %798 = vmatpush1.msra.mxu0 0.0
        %799 = vmatprep.subr.mxu0 0.0
        %800 = vmatpush1.msra.mxu0 0.0
        %801 = vmatprep.subr.mxu0 0.0
        %802 = vmatpush1.msra.mxu0 0.0
        %803 = vmatprep.subr.mxu0 0.0
        %804 = vmatpush1.msra.mxu0 0.0
        %805 = vmatprep.subr.mxu0 0.0
        %806 = vmatpush1.msra.mxu0 0.0
        %807 = vmatprep.subr.mxu0 0.0
        %808 = vmatpush1.msra.mxu0 0.0
        %809 = vmatprep.subr.mxu0 0.0
        %810 = vmatpush1.msra.mxu0 0.0
        %811 = vmatprep.subr.mxu0 0.0
        %812 = vmatpush1.msra.mxu0 0.0
        %813 = vmatprep.subr.mxu0 0.0
        %814 = vmatpush1.msra.mxu0 0.0
        %815 = vmatprep.subr.mxu0 0.0
        %816 = vmatpush1.msra.mxu0 0.0
        %817 = vmatprep.subr.mxu0 0.0
        %818 = vmatpush1.msra.mxu0 0.0
        %819 = vmatprep.subr.mxu0 0.0
        %820 = vmatpush1.msra.mxu0 0.0
        %821 = vmatprep.subr.mxu0 0.0
        %822 = vmatpush1.msra.mxu0 0.0
        %823 = vmatprep.mubr.f32.mxu0 0.0
        %824 = vmatmul.mubr.f32.gmra.mrb[0].mxu0 %v751
        %v825 = vpop.f32.mrb[0].mxu0
        %v826 = vadd.f32 0.0, %v825
        %v827 = vpop.f32.mrb[0].mxu0
        %v828 = vadd.f32 0.0, %v827
        %829 = vdwg.mxu0
        %830 = vmatprep.subr.mxu0 0.0
        %831 = vmatpush1.msra.mxu0 %v530
        %832 = vmatprep.subr.mxu0 0.0
        %833 = vmatpush1.msra.mxu0 %v533
        %834 = vmatprep.subr.mxu0 0.0
        %835 = vmatpush1.msra.mxu0 %v536
        %836 = vmatprep.subr.mxu0 0.0
        %837 = vmatpush1.msra.mxu0 %v539
        %838 = vmatprep.subr.mxu0 0.0
        %839 = vmatpush1.msra.mxu0 %v542
        %840 = vmatprep.subr.mxu0 0.0
        %841 = vmatpush1.msra.mxu0 %v545
        %842 = vmatprep.subr.mxu0 0.0
        %843 = vmatpush1.msra.mxu0 %v548
        %844 = vmatprep.subr.mxu0 0.0
        %845 = vmatpush1.msra.mxu0 %v551
        %846 = vmatprep.subr.mxu0 0.0
        %847 = vmatpush1.msra.mxu0 %v554
        %848 = vmatprep.subr.mxu0 0.0
        %849 = vmatpush1.msra.mxu0 %v557
        %850 = vmatprep.subr.mxu0 0.0
        %851 = vmatpush1.msra.mxu0 %v560
        %852 = vmatprep.subr.mxu0 0.0
        %853 = vmatpush1.msra.mxu0 %v563
        %854 = vmatprep.subr.mxu0 0.0
        %855 = vmatpush1.msra.mxu0 %v566
        %856 = vmatprep.subr.mxu0 0.0
        %857 = vmatpush1.msra.mxu0 %v569
        %858 = vmatprep.subr.mxu0 0.0
        %859 = vmatpush1.msra.mxu0 %v572
        %860 = vmatprep.subr.mxu0 0.0
        %861 = vmatpush1.msra.mxu0 %v575
        %862 = vmatprep.subr.mxu0 0.0
        %863 = vmatpush1.msra.mxu0 0.0
        %864 = vmatprep.subr.mxu0 0.0
        %865 = vmatpush1.msra.mxu0 0.0
        %866 = vmatprep.subr.mxu0 0.0
        %867 = vmatpush1.msra.mxu0 0.0
        %868 = vmatprep.subr.mxu0 0.0
        %869 = vmatpush1.msra.mxu0 0.0
        %870 = vmatprep.subr.mxu0 0.0
        %871 = vmatpush1.msra.mxu0 0.0
        %872 = vmatprep.subr.mxu0 0.0
        %873 = vmatpush1.msra.mxu0 0.0
        %874 = vmatprep.subr.mxu0 0.0
        %875 = vmatpush1.msra.mxu0 0.0
        %876 = vmatprep.subr.mxu0 0.0
        %877 = vmatpush1.msra.mxu0 0.0
        %878 = vmatprep.subr.mxu0 0.0
        %879 = vmatpush1.msra.mxu0 0.0
        %880 = vmatprep.subr.mxu0 0.0
        %881 = vmatpush1.msra.mxu0 0.0
        %882 = vmatprep.subr.mxu0 0.0
        %883 = vmatpush1.msra.mxu0 0.0
        %884 = vmatprep.subr.mxu0 0.0
        %885 = vmatpush1.msra.mxu0 0.0
        %886 = vmatprep.subr.mxu0 0.0
        %887 = vmatpush1.msra.mxu0 0.0
        %888 = vmatprep.subr.mxu0 0.0
        %889 = vmatpush1.msra.mxu0 0.0
        %890 = vmatprep.subr.mxu0 0.0
        %891 = vmatpush1.msra.mxu0 0.0
        %892 = vmatprep.subr.mxu0 0.0
        %893 = vmatpush1.msra.mxu0 0.0
        %894 = vmatprep.mubr.f32.mxu0 0.0
        %895 = vmatmul.mubr.f32.gmra.mrb[0].mxu0 %v751
        %v896 = vpop.f32.mrb[0].mxu0
        %v897 = vadd.f32 0.0, %v896
        %v898 = vpop.f32.mrb[0].mxu0
        %899 = vdwg.mxu0
        %v900 = vadd.f32 %v756, %v826
        %v901 = vadd.f32 %v757, %v828
        %v902 = vxor.u32 %v900, 2147483648
        %v903 = vxor.u32 %v901, 2147483648
        %v904 = vmul.f32 %v902, 1.442695
        %v905 = vpow.pop %v904
        %v906 = vmul.f32 %v903, 1.442695
        %v907 = vpow.pop %v906
        %v908 = vadd.f32 %v905, 1.0
        %v909 = vadd.f32 %v907, 1.0
        %v910 = vrcp.pop %v908
        %v911 = vmul.f32 1.0, %v910
        %v912 = vrcp.pop %v909
        %v913 = vmul.f32 1.0, %v912
        %v914 = vadd.f32 %v897, %v581
        %v915 = vmul.f32 %v911, %v914
        %v916 = vadd.f32 %v758, %v915
        %v917 = vtanh.pop %v916
        %v918 = vsub.f32 %v751, %v917
        %v919 = vmul.f32 %v913, %v918
        %v920 = vadd.f32 %v917, %v919
        %s921 = scalar_lea.vmem [#allocation4], 8
        %922 = vst [vmem:[%s921] sm:$0xff] %v920
        %s923 = smul.u32 2, 3
        %s924 = smul.addr %s923, 8
        %s925 = scalar_lea.vmem [#allocation3], %s924
        %v926 = vld [vmem:[%s925] sm:$0xff]
        %v927 = vld [vmem:[%s925 + $0x8] sm:$0xff]
        %v928 = vld [vmem:[%s925 + $0x10] sm:$0xff]
        %929 = vmatprep.subr.mxu0 %v529
        %930 = vmatpush1.msra.mxu0 %v528
        %931 = vmatprep.subr.mxu0 %v532
        %932 = vmatpush1.msra.mxu0 %v531
        %933 = vmatprep.subr.mxu0 %v535
        %934 = vmatpush1.msra.mxu0 %v534
        %935 = vmatprep.subr.mxu0 %v538
        %936 = vmatpush1.msra.mxu0 %v537
        %937 = vmatprep.subr.mxu0 %v541
        %938 = vmatpush1.msra.mxu0 %v540
        %939 = vmatprep.subr.mxu0 %v544
        %940 = vmatpush1.msra.mxu0 %v543
        %941 = vmatprep.subr.mxu0 %v547
        %942 = vmatpush1.msra.mxu0 %v546
        %943 = vmatprep.subr.mxu0 %v550
        %944 = vmatpush1.msra.mxu0 %v549
        %945 = vmatprep.subr.mxu0 %v553
        %946 = vmatpush1.msra.mxu0 %v552
        %947 = vmatprep.subr.mxu0 %v556
        %948 = vmatpush1.msra.mxu0 %v555
        %949 = vmatprep.subr.mxu0 %v559
        %950 = vmatpush1.msra.mxu0 %v558
        %951 = vmatprep.subr.mxu0 %v562
        %952 = vmatpush1.msra.mxu0 %v561
        %953 = vmatprep.subr.mxu0 %v565
        %954 = vmatpush1.msra.mxu0 %v564
        %955 = vmatprep.subr.mxu0 %v568
        %956 = vmatpush1.msra.mxu0 %v567
        %957 = vmatprep.subr.mxu0 %v571
        %958 = vmatpush1.msra.mxu0 %v570
        %959 = vmatprep.subr.mxu0 %v574
        %960 = vmatpush1.msra.mxu0 %v573
        %961 = vmatprep.subr.mxu0 0.0
        %962 = vmatpush1.msra.mxu0 0.0
        %963 = vmatprep.subr.mxu0 0.0
        %964 = vmatpush1.msra.mxu0 0.0
        %965 = vmatprep.subr.mxu0 0.0
        %966 = vmatpush1.msra.mxu0 0.0
        %967 = vmatprep.subr.mxu0 0.0
        %968 = vmatpush1.msra.mxu0 0.0
        %969 = vmatprep.subr.mxu0 0.0
        %970 = vmatpush1.msra.mxu0 0.0
        %971 = vmatprep.subr.mxu0 0.0
        %972 = vmatpush1.msra.mxu0 0.0
        %973 = vmatprep.subr.mxu0 0.0
        %974 = vmatpush1.msra.mxu0 0.0
        %975 = vmatprep.subr.mxu0 0.0
        %976 = vmatpush1.msra.mxu0 0.0
        %977 = vmatprep.subr.mxu0 0.0
        %978 = vmatpush1.msra.mxu0 0.0
        %979 = vmatprep.subr.mxu0 0.0
        %980 = vmatpush1.msra.mxu0 0.0
        %981 = vmatprep.subr.mxu0 0.0
        %982 = vmatpush1.msra.mxu0 0.0
        %983 = vmatprep.subr.mxu0 0.0
        %984 = vmatpush1.msra.mxu0 0.0
        %985 = vmatprep.subr.mxu0 0.0
        %986 = vmatpush1.msra.mxu0 0.0
        %987 = vmatprep.subr.mxu0 0.0
        %988 = vmatpush1.msra.mxu0 0.0
        %989 = vmatprep.subr.mxu0 0.0
        %990 = vmatpush1.msra.mxu0 0.0
        %991 = vmatprep.subr.mxu0 0.0
        %992 = vmatpush1.msra.mxu0 0.0
        %993 = vmatprep.mubr.f32.mxu0 0.0
        %994 = vmatmul.mubr.f32.gmra.mrb[0].mxu0 %v920
        %v995 = vpop.f32.mrb[0].mxu0
        %v996 = vadd.f32 0.0, %v995
        %v997 = vpop.f32.mrb[0].mxu0
        %v998 = vadd.f32 0.0, %v997
        %999 = vdwg.mxu0
        %1000 = vmatprep.subr.mxu0 0.0
        %1001 = vmatpush1.msra.mxu0 %v530
        %1002 = vmatprep.subr.mxu0 0.0
        %1003 = vmatpush1.msra.mxu0 %v533
        %1004 = vmatprep.subr.mxu0 0.0
        %1005 = vmatpush1.msra.mxu0 %v536
        %1006 = vmatprep.subr.mxu0 0.0
        %1007 = vmatpush1.msra.mxu0 %v539
        %1008 = vmatprep.subr.mxu0 0.0
        %1009 = vmatpush1.msra.mxu0 %v542
        %1010 = vmatprep.subr.mxu0 0.0
        %1011 = vmatpush1.msra.mxu0 %v545
        %1012 = vmatprep.subr.mxu0 0.0
        %1013 = vmatpush1.msra.mxu0 %v548
        %1014 = vmatprep.subr.mxu0 0.0
        %1015 = vmatpush1.msra.mxu0 %v551
        %1016 = vmatprep.subr.mxu0 0.0
        %1017 = vmatpush1.msra.mxu0 %v554
        %1018 = vmatprep.subr.mxu0 0.0
        %1019 = vmatpush1.msra.mxu0 %v557
        %1020 = vmatprep.subr.mxu0 0.0
        %1021 = vmatpush1.msra.mxu0 %v560
        %1022 = vmatprep.subr.mxu0 0.0
        %1023 = vmatpush1.msra.mxu0 %v563
        %1024 = vmatprep.subr.mxu0 0.0
        %1025 = vmatpush1.msra.mxu0 %v566
        %1026 = vmatprep.subr.mxu0 0.0
        %1027 = vmatpush1.msra.mxu0 %v569
        %1028 = vmatprep.subr.mxu0 0.0
        %1029 = vmatpush1.msra.mxu0 %v572
        %1030 = vmatprep.subr.mxu0 0.0
        %1031 = vmatpush1.msra.mxu0 %v575
        %1032 = vmatprep.subr.mxu0 0.0
        %1033 = vmatpush1.msra.mxu0 0.0
        %1034 = vmatprep.subr.mxu0 0.0
        %1035 = vmatpush1.msra.mxu0 0.0
        %1036 = vmatprep.subr.mxu0 0.0
        %1037 = vmatpush1.msra.mxu0 0.0
        %1038 = vmatprep.subr.mxu0 0.0
        %1039 = vmatpush1.msra.mxu0 0.0
        %1040 = vmatprep.subr.mxu0 0.0
        %1041 = vmatpush1.msra.mxu0 0.0
        %1042 = vmatprep.subr.mxu0 0.0
        %1043 = vmatpush1.msra.mxu0 0.0
        %1044 = vmatprep.subr.mxu0 0.0
        %1045 = vmatpush1.msra.mxu0 0.0
        %1046 = vmatprep.subr.mxu0 0.0
        %1047 = vmatpush1.msra.mxu0 0.0
        %1048 = vmatprep.subr.mxu0 0.0
        %1049 = vmatpush1.msra.mxu0 0.0
        %1050 = vmatprep.subr.mxu0 0.0
        %1051 = vmatpush1.msra.mxu0 0.0
        %1052 = vmatprep.subr.mxu0 0.0
        %1053 = vmatpush1.msra.mxu0 0.0
        %1054 = vmatprep.subr.mxu0 0.0
        %1055 = vmatpush1.msra.mxu0 0.0
        %1056 = vmatprep.subr.mxu0 0.0
        %1057 = vmatpush1.msra.mxu0 0.0
        %1058 = vmatprep.subr.mxu0 0.0
        %1059 = vmatpush1.msra.mxu0 0.0
        %1060 = vmatprep.subr.mxu0 0.0
        %1061 = vmatpush1.msra.mxu0 0.0
        %1062 = vmatprep.subr.mxu0 0.0
        %1063 = vmatpush1.msra.mxu0 0.0
        %1064 = vmatprep.mubr.f32.mxu0 0.0
        %1065 = vmatmul.mubr.f32.gmra.mrb[0].mxu0 %v920
        %v1066 = vpop.f32.mrb[0].mxu0
        %v1067 = vadd.f32 0.0, %v1066
        %v1068 = vpop.f32.mrb[0].mxu0
        %1069 = vdwg.mxu0
        %v1070 = vadd.f32 %v926, %v996
        %v1071 = vadd.f32 %v927, %v998
        %v1072 = vxor.u32 %v1070, 2147483648
        %v1073 = vxor.u32 %v1071, 2147483648
        %v1074 = vmul.f32 %v1072, 1.442695
        %v1075 = vpow.pop %v1074
        %v1076 = vmul.f32 %v1073, 1.442695
        %v1077 = vpow.pop %v1076
        %v1078 = vadd.f32 %v1075, 1.0
        %v1079 = vadd.f32 %v1077, 1.0
        %v1080 = vrcp.pop %v1078
        %v1081 = vmul.f32 1.0, %v1080
        %v1082 = vrcp.pop %v1079
        %v1083 = vmul.f32 1.0, %v1082
        %v1084 = vadd.f32 %v1067, %v581
        %v1085 = vmul.f32 %v1081, %v1084
        %v1086 = vadd.f32 %v928, %v1085
        %v1087 = vtanh.pop %v1086
        %v1088 = vsub.f32 %v920, %v1087
        %v1089 = vmul.f32 %v1083, %v1088
        %v1090 = vadd.f32 %v1087, %v1089
        %s1091 = scalar_lea.vmem [#allocation4], 16
        %1092 = vst [vmem:[%s1091] sm:$0xff] %v1090
        %s1093 = smul.u32 3, 3
        %s1094 = smul.addr %s1093, 8
        %s1095 = scalar_lea.vmem [#allocation3], %s1094
        %v1096 = vld [vmem:[%s1095] sm:$0xff]
        %v1097 = vld [vmem:[%s1095 + $0x8] sm:$0xff]
        %v1098 = vld [vmem:[%s1095 + $0x10] sm:$0xff]
        %1099 = vmatprep.subr.mxu0 %v529
        %1100 = vmatpush1.msra.mxu0 %v528
        %1101 = vmatprep.subr.mxu0 %v532
        %1102 = vmatpush1.msra.mxu0 %v531
        %1103 = vmatprep.subr.mxu0 %v535
        %1104 = vmatpush1.msra.mxu0 %v534
        %1105 = vmatprep.subr.mxu0 %v538
        %1106 = vmatpush1.msra.mxu0 %v537
        %1107 = vmatprep.subr.mxu0 %v541
        %1108 = vmatpush1.msra.mxu0 %v540
        %1109 = vmatprep.subr.mxu0 %v544
        %1110 = vmatpush1.msra.mxu0 %v543
        %1111 = vmatprep.subr.mxu0 %v547
        %1112 = vmatpush1.msra.mxu0 %v546
        %1113 = vmatprep.subr.mxu0 %v550
        %1114 = vmatpush1.msra.mxu0 %v549
        %1115 = vmatprep.subr.mxu0 %v553
        %1116 = vmatpush1.msra.mxu0 %v552
        %1117 = vmatprep.subr.mxu0 %v556
        %1118 = vmatpush1.msra.mxu0 %v555
        %1119 = vmatprep.subr.mxu0 %v559
        %1120 = vmatpush1.msra.mxu0 %v558
        %1121 = vmatprep.subr.mxu0 %v562
        %1122 = vmatpush1.msra.mxu0 %v561
        %1123 = vmatprep.subr.mxu0 %v565
        %1124 = vmatpush1.msra.mxu0 %v564
        %1125 = vmatprep.subr.mxu0 %v568
        %1126 = vmatpush1.msra.mxu0 %v567
        %1127 = vmatprep.subr.mxu0 %v571
        %1128 = vmatpush1.msra.mxu0 %v570
        %1129 = vmatprep.subr.mxu0 %v574
        %1130 = vmatpush1.msra.mxu0 %v573
        %1131 = vmatprep.subr.mxu0 0.0
        %1132 = vmatpush1.msra.mxu0 0.0
        %1133 = vmatprep.subr.mxu0 0.0
        %1134 = vmatpush1.msra.mxu0 0.0
        %1135 = vmatprep.subr.mxu0 0.0
        %1136 = vmatpush1.msra.mxu0 0.0
        %1137 = vmatprep.subr.mxu0 0.0
        %1138 = vmatpush1.msra.mxu0 0.0
        %1139 = vmatprep.subr.mxu0 0.0
        %1140 = vmatpush1.msra.mxu0 0.0
        %1141 = vmatprep.subr.mxu0 0.0
        %1142 = vmatpush1.msra.mxu0 0.0
        %1143 = vmatprep.subr.mxu0 0.0
        %1144 = vmatpush1.msra.mxu0 0.0
        %1145 = vmatprep.subr.mxu0 0.0
        %1146 = vmatpush1.msra.mxu0 0.0
        %1147 = vmatprep.subr.mxu0 0.0
        %1148 = vmatpush1.msra.mxu0 0.0
        %1149 = vmatprep.subr.mxu0 0.0
        %1150 = vmatpush1.msra.mxu0 0.0
        %1151 = vmatprep.subr.mxu0 0.0
        %1152 = vmatpush1.msra.mxu0 0.0
        %1153 = vmatprep.subr.mxu0 0.0
        %1154 = vmatpush1.msra.mxu0 0.0
        %1155 = vmatprep.subr.mxu0 0.0
        %1156 = vmatpush1.msra.mxu0 0.0
        %1157 = vmatprep.subr.mxu0 0.0
        %1158 = vmatpush1.msra.mxu0 0.0
        %1159 = vmatprep.subr.mxu0 0.0
        %1160 = vmatpush1.msra.mxu0 0.0
        %1161 = vmatprep.subr.mxu0 0.0
        %1162 = vmatpush1.msra.mxu0 0.0
        %1163 = vmatprep.mubr.f32.mxu0 0.0
        %1164 = vmatmul.mubr.f32.gmra.mrb[0].mxu0 %v1090
        %v1165 = vpop.f32.mrb[0].mxu0
        %v1166 = vadd.f32 0.0, %v1165
        %v1167 = vpop.f32.mrb[0].mxu0
        %v1168 = vadd.f32 0.0, %v1167
        %1169 = vdwg.mxu0
        %1170 = vmatprep.subr.mxu0 0.0
        %1171 = vmatpush1.msra.mxu0 %v530
        %1172 = vmatprep.subr.mxu0 0.0
        %1173 = vmatpush1.msra.mxu0 %v533
        %1174 = vmatprep.subr.mxu0 0.0
        %1175 = vmatpush1.msra.mxu0 %v536
        %1176 = vmatprep.subr.mxu0 0.0
        %1177 = vmatpush1.msra.mxu0 %v539
        %1178 = vmatprep.subr.mxu0 0.0
        %1179 = vmatpush1.msra.mxu0 %v542
        %1180 = vmatprep.subr.mxu0 0.0
        %1181 = vmatpush1.msra.mxu0 %v545
        %1182 = vmatprep.subr.mxu0 0.0
        %1183 = vmatpush1.msra.mxu0 %v548
        %1184 = vmatprep.subr.mxu0 0.0
        %1185 = vmatpush1.msra.mxu0 %v551
        %1186 = vmatprep.subr.mxu0 0.0
        %1187 = vmatpush1.msra.mxu0 %v554
        %1188 = vmatprep.subr.mxu0 0.0
        %1189 = vmatpush1.msra.mxu0 %v557
        %1190 = vmatprep.subr.mxu0 0.0
        %1191 = vmatpush1.msra.mxu0 %v560
        %1192 = vmatprep.subr.mxu0 0.0
        %1193 = vmatpush1.msra.mxu0 %v563
        %1194 = vmatprep.subr.mxu0 0.0
        %1195 = vmatpush1.msra.mxu0 %v566
        %1196 = vmatprep.subr.mxu0 0.0
        %1197 = vmatpush1.msra.mxu0 %v569
        %1198 = vmatprep.subr.mxu0 0.0
        %1199 = vmatpush1.msra.mxu0 %v572
        %1200 = vmatprep.subr.mxu0 0.0
        %1201 = vmatpush1.msra.mxu0 %v575
        %1202 = vmatprep.subr.mxu0 0.0
        %1203 = vmatpush1.msra.mxu0 0.0
        %1204 = vmatprep.subr.mxu0 0.0
        %1205 = vmatpush1.msra.mxu0 0.0
        %1206 = vmatprep.subr.mxu0 0.0
        %1207 = vmatpush1.msra.mxu0 0.0
        %1208 = vmatprep.subr.mxu0 0.0
        %1209 = vmatpush1.msra.mxu0 0.0
        %1210 = vmatprep.subr.mxu0 0.0
        %1211 = vmatpush1.msra.mxu0 0.0
        %1212 = vmatprep.subr.mxu0 0.0
        %1213 = vmatpush1.msra.mxu0 0.0
        %1214 = vmatprep.subr.mxu0 0.0
        %1215 = vmatpush1.msra.mxu0 0.0
        %1216 = vmatprep.subr.mxu0 0.0
        %1217 = vmatpush1.msra.mxu0 0.0
        %1218 = vmatprep.subr.mxu0 0.0
        %1219 = vmatpush1.msra.mxu0 0.0
        %1220 = vmatprep.subr.mxu0 0.0
        %1221 = vmatpush1.msra.mxu0 0.0
        %1222 = vmatprep.subr.mxu0 0.0
        %1223 = vmatpush1.msra.mxu0 0.0
        %1224 = vmatprep.subr.mxu0 0.0
        %1225 = vmatpush1.msra.mxu0 0.0
        %1226 = vmatprep.subr.mxu0 0.0
        %1227 = vmatpush1.msra.mxu0 0.0
        %1228 = vmatprep.subr.mxu0 0.0
        %1229 = vmatpush1.msra.mxu0 0.0
        %1230 = vmatprep.subr.mxu0 0.0
        %1231 = vmatpush1.msra.mxu0 0.0
        %1232 = vmatprep.subr.mxu0 0.0
        %1233 = vmatpush1.msra.mxu0 0.0
        %1234 = vmatprep.mubr.f32.mxu0 0.0
        %1235 = vmatmul.mubr.f32.gmra.mrb[0].mxu0 %v1090
        %v1236 = vpop.f32.mrb[0].mxu0
        %v1237 = vadd.f32 0.0, %v1236
        %v1238 = vpop.f32.mrb[0].mxu0
        %1239 = vdwg.mxu0
        %v1240 = vadd.f32 %v1096, %v1166
        %v1241 = vadd.f32 %v1097, %v1168
        %v1242 = vxor.u32 %v1240, 2147483648
        %v1243 = vxor.u32 %v1241, 2147483648
        %v1244 = vmul.f32 %v1242, 1.442695
        %v1245 = vpow.pop %v1244
        %v1246 = vmul.f32 %v1243, 1.442695
        %v1247 = vpow.pop %v1246
        %v1248 = vadd.f32 %v1245, 1.0
        %v1249 = vadd.f32 %v1247, 1.0
        %v1250 = vrcp.pop %v1248
        %v1251 = vmul.f32 1.0, %v1250
        %v1252 = vrcp.pop %v1249
        %v1253 = vmul.f32 1.0, %v1252
        %v1254 = vadd.f32 %v1237, %v581
        %v1255 = vmul.f32 %v1251, %v1254
        %v1256 = vadd.f32 %v1098, %v1255
        %v1257 = vtanh.pop %v1256
        %v1258 = vsub.f32 %v1090, %v1257
        %v1259 = vmul.f32 %v1253, %v1258
        %v1260 = vadd.f32 %v1257, %v1259
        %s1261 = scalar_lea.vmem [#allocation4], 24
        %1262 = vst [vmem:[%s1261] sm:$0xff] %v1260
        %1263 = vst [vmem:[#allocation2] sm:$0xff] %v1260
        %v1264 = vld [vmem:[#allocation4] sm:$0xff]
        %v1265 = vld [vmem:[#allocation4 + $0x8] sm:$0xff]
        %v1266 = vld [vmem:[#allocation4 + $0x10] sm:$0xff]
        %v1267 = vld [vmem:[#allocation4 + $0x18] sm:$0xff]
        %v1268 = vld [vmem:[%s5] sm:$0xff]
        %v1269 = vld [vmem:[%s5 + $0x8] sm:$0xff]
        %v1270 = vld [vmem:[%s5 + $0x10] sm:$0xff]
        %v1271 = vld [vmem:[%s5 + $0x18] sm:$0xff]
        %v1272 = vld [vmem:[%s5 + $0x20] sm:$0xff]
        %v1273 = vld [vmem:[%s5 + $0x28] sm:$0xff]
        %v1274 = vld [vmem:[%s5 + $0x30] sm:$0xff]
        %v1275 = vld [vmem:[%s5 + $0x38] sm:$0xff]
        %v1276 = vld [vmem:[%s5 + $0x40] sm:$0xff]
        %v1277 = vld [vmem:[%s5 + $0x48] sm:$0xff]
        %v1278 = vld [vmem:[%s5 + $0x50] sm:$0xff]
        %v1279 = vld [vmem:[%s5 + $0x58] sm:$0xff]
        %v1280 = vld [vmem:[%s5 + $0x60] sm:$0xff]
        %v1281 = vld [vmem:[%s5 + $0x68] sm:$0xff]
        %v1282 = vld [vmem:[%s5 + $0x70] sm:$0xff]
        %v1283 = vld [vmem:[%s5 + $0x78] sm:$0xff]
        %v1284 = vld [vmem:[%s6] sm:$0x1]
        %v1286 = vlaneseq
        %v1287 = vshrl.u32 %v1286, 7
        %v1288 = vsub.s32 0, %v1287
        %v1289 = vrot.slane %v1284, %v1288
        %1291 = vmatprep.subr.mxu0 0.0
        %1292 = vmatpush1.msra.mxu0 %v1268
        %1293 = vmatprep.subr.mxu0 0.0
        %1294 = vmatpush1.msra.mxu0 %v1269
        %1295 = vmatprep.subr.mxu0 0.0
        %1296 = vmatpush1.msra.mxu0 %v1270
        %1297 = vmatprep.subr.mxu0 0.0
        %1298 = vmatpush1.msra.mxu0 %v1271
        %1299 = vmatprep.subr.mxu0 0.0
        %1300 = vmatpush1.msra.mxu0 %v1272
        %1301 = vmatprep.subr.mxu0 0.0
        %1302 = vmatpush1.msra.mxu0 %v1273
        %1303 = vmatprep.subr.mxu0 0.0
        %1304 = vmatpush1.msra.mxu0 %v1274
        %1305 = vmatprep.subr.mxu0 0.0
        %1306 = vmatpush1.msra.mxu0 %v1275
        %1307 = vmatprep.subr.mxu0 0.0
        %1308 = vmatpush1.msra.mxu0 %v1276
        %1309 = vmatprep.subr.mxu0 0.0
        %1310 = vmatpush1.msra.mxu0 %v1277
        %1311 = vmatprep.subr.mxu0 0.0
        %1312 = vmatpush1.msra.mxu0 %v1278
        %1313 = vmatprep.subr.mxu0 0.0
        %1314 = vmatpush1.msra.mxu0 %v1279
        %1315 = vmatprep.subr.mxu0 0.0
        %1316 = vmatpush1.msra.mxu0 %v1280
        %1317 = vmatprep.subr.mxu0 0.0
        %1318 = vmatpush1.msra.mxu0 %v1281
        %1319 = vmatprep.subr.mxu0 0.0
        %1320 = vmatpush1.msra.mxu0 %v1282
        %1321 = vmatprep.subr.mxu0 0.0
        %1322 = vmatpush1.msra.mxu0 %v1283
        %1323 = vmatprep.subr.mxu0 0.0
        %1324 = vmatpush1.msra.mxu0 0.0
        %1325 = vmatprep.subr.mxu0 0.0
        %1326 = vmatpush1.msra.mxu0 0.0
        %1327 = vmatprep.subr.mxu0 0.0
        %1328 = vmatpush1.msra.mxu0 0.0
        %1329 = vmatprep.subr.mxu0 0.0
        %1330 = vmatpush1.msra.mxu0 0.0
        %1331 = vmatprep.subr.mxu0 0.0
        %1332 = vmatpush1.msra.mxu0 0.0
        %1333 = vmatprep.subr.mxu0 0.0
        %1334 = vmatpush1.msra.mxu0 0.0
        %1335 = vmatprep.subr.mxu0 0.0
        %1336 = vmatpush1.msra.mxu0 0.0
        %1337 = vmatprep.subr.mxu0 0.0
        %1338 = vmatpush1.msra.mxu0 0.0
        %1339 = vmatprep.subr.mxu0 0.0
        %1340 = vmatpush1.msra.mxu0 0.0
        %1341 = vmatprep.subr.mxu0 0.0
        %1342 = vmatpush1.msra.mxu0 0.0
        %1343 = vmatprep.subr.mxu0 0.0
        %1344 = vmatpush1.msra.mxu0 0.0
        %1345 = vmatprep.subr.mxu0 0.0
        %1346 = vmatpush1.msra.mxu0 0.0
        %1347 = vmatprep.subr.mxu0 0.0
        %1348 = vmatpush1.msra.mxu0 0.0
        %1349 = vmatprep.subr.mxu0 0.0
        %1350 = vmatpush1.msra.mxu0 0.0
        %1351 = vmatprep.subr.mxu0 0.0
        %1352 = vmatpush1.msra.mxu0 0.0
        %1353 = vmatprep.subr.mxu0 0.0
        %1354 = vmatpush1.msra.mxu0 0.0
        %1355 = vmatprep.mubr.f32.mxu0 0.0
        %1356 = vmatmul.mubr.f32.gmra.mrb[0].mxu0 %v1264
        %v1357 = vpop.f32.mrb[0].mxu0
        %v1358 = vadd.f32 %v1289, %v1357
        %v1359 = vpop.f32.mrb[0].mxu0
        %1360 = vmatprep.mubr.f32.mxu0 0.0
        %1361 = vmatmul.mubr.f32.gmra.mrb[0].mxu0 %v1265
        %v1362 = vpop.f32.mrb[0].mxu0
        %v1363 = vadd.f32 %v1289, %v1362
        %v1364 = vpop.f32.mrb[0].mxu0
        %1365 = vmatprep.mubr.f32.mxu0 0.0
        %1366 = vmatmul.mubr.f32.gmra.mrb[0].mxu0 %v1266
        %v1367 = vpop.f32.mrb[0].mxu0
        %v1368 = vadd.f32 %v1289, %v1367
        %v1369 = vpop.f32.mrb[0].mxu0
        %1370 = vmatprep.mubr.f32.mxu0 0.0
        %1371 = vmatmul.mubr.f32.gmra.mrb[0].mxu0 %v1267
        %v1372 = vpop.f32.mrb[0].mxu0
        %v1373 = vadd.f32 %v1289, %v1372
        %v1374 = vpop.f32.mrb[0].mxu0
        %1375 = vdwg.mxu0
        %v1376 = vtanh.pop %v1358
        %v1377 = vtanh.pop %v1363
        %v1378 = vtanh.pop %v1368
        %v1379 = vtanh.pop %v1373
        %1380 = vst.msk [vmem:[%s295] sm:$0xff] %vm329, %v1376
        %1381 = vst.msk [vmem:[%s295 + $0x8] sm:$0xff] %vm329, %v1377
        %1382 = vst.msk [vmem:[%s295 + $0x10] sm:$0xff] %vm329, %v1378
        %1383 = vst.msk [vmem:[%s295 + $0x18] sm:$0xff] %vm329, %v1379
        %s1384 = smul.u32 4, %s19
        %p1385 = scmp.lt.s32.totalorder %s1384, 7
        %s1386 = scalar_select %p1385, %s1384, 7
        %s1387 = smul.addr %s1386, 8
        %s1388 = scalar_lea.vmem %s7, %s1387
        // Predicated region
        $region57: #{tpu_custom_call.1} parent=47 // pred_check
          %p1389 = pneg %p189
        $region58: #{tpu_custom_call.1} parent=47 // pred_check_branch
          %1391 = sbr.rel (%p1389) target = $region60
        $region59: #{tpu_custom_call.1} parent=47 // pred_region
          %s1392 = smul.u32 4, %s19
        $region60: #{tpu_custom_call.1} parent=47 // pred_fallthru
          _
      $region48: #{tpu_custom_call.1} parent=5 // pred_fallthru
        _
      %p1393 = scmp.le.s32.totalorder 2, %s14
      // Predicated region
      $region61: #{tpu_custom_call.1} parent=5 // pred_check
        %p1394 = pneg %p1393
      $region62: #{tpu_custom_call.1} parent=5 // pred_check_branch
        %1396 = sbr.rel (%p1394) target = $region64
      $region63: #{tpu_custom_call.1} parent=5 // pred_region
        %s1397 = ssub.s32 %s14, 2
        // Predicated region
        $region65: #{tpu_custom_call.1} parent=63 // pred_check
          %p1398 = pneg %p195
        $region66: #{tpu_custom_call.1} parent=63 // pred_check_branch
          %1400 = sbr.rel (%p1398) target = $region68
        $region67: #{tpu_custom_call.1} parent=63 // pred_region
          %s1401 = smul.u32 4, %s20
          %p1402 = scmp.lt.s32.totalorder %s1401, 7
          %s1403 = scalar_select %p1402, %s1401, 7
          %s1404 = smul.addr %s1403, 8
          %s1405 = scalar_lea.vmem %s7, %s1404
        $region68: #{tpu_custom_call.1} parent=63 // pred_fallthru
          _
      $region64: #{tpu_custom_call.1} parent=5 // pred_fallthru
        _
    $region6: #{tpu_custom_call.1} parent=1 // loop_footer
      %s18 = sadd.s32 1, %s14
    $region7: #{tpu_custom_call.1} parent=1 // loop_footer_branch
      %13 = sbr.rel target = $region3
    $region8: #{tpu_custom_call.1} parent=1 // loop_exit
      _
    %1406 = vsyncpa [#allocation6], 1
    %s1407 = scalar_lea.sflag [#allocation6], 1
    %1408 = vsyncpa %s1407, 1

</llo_original>
